<compile_context>
chip_gen: v5e
topology: v5e:2x2
jax: 0.10.0
libtpu: 0.0.40
codegen_flags: <defaults>
</compile_context>

<pallas_src>
import functools

import jax
import jax.numpy as jnp
from jax import lax
from jax.experimental import pallas as pl
from jax.experimental.pallas import tpu as pltpu


# ----------------------------------------------------------------------------
# In-kernel helpers
# ----------------------------------------------------------------------------
def _sel(mask, a, b):
    """Exact select with a {0.0, 1.0} f32 mask: mask*a + (1-mask)*b.

    mask: (1, P) f32; a, b: (C, P) f32.  Exact because the mask is 0/1 and
    the products/sums are then exact; avoids boolean-mask broadcasts.
    """
    return mask * a + (1.0 - mask) * b


def _mix(w_oi, b, use_mxu):
    """Channel mix for one tap: (Cout, Cin) x (Cin, P) -> (Cout, P) f32."""
    if use_mxu:
        return lax.dot_general(
            w_oi, b,
            dimension_numbers=(((1,), (0,)), ((), ())),
            preferred_element_type=jnp.float32)
    # Small-C path: VPU outer-product MAC (skip the MXU, per review).
    cin = b.shape[0]
    acc = w_oi[:, 0:1] * b[0:1, :]
    for ci in range(1, cin):
        acc = acc + w_oi[:, ci:ci + 1] * b[ci:ci + 1, :]
    return acc


def _conv3x3_reflect_flat(x, w_ref, masks, width, use_mxu):
    """3x3 conv with 1-pixel reflect padding on a row-major flattened image.

    x:      (Cin, P) f32 activations, P = H*W (row-major).
    w_ref:  (3, 3, Cout, Cin) weight ref, indexed (ky, kx, out, in).
    masks:  (w_first, w_last, h_first, h_last), each (1, P) f32 in {0, 1}.
    width:  W (static python int).
    Returns (Cout, P) f32.
    """
    w_first, w_last, h_first, h_last = masks
    p = x.shape[-1]

    # Column-shifted bases (reflect across the left/right image border).
    # pltpu.roll follows jnp.roll semantics: roll(x, s)[i] == x[(i - s) % n].
    x_east = pltpu.roll(x, p - 1, axis=1)     # value at flat p+1 == x[h, w+1]
    x_west = pltpu.roll(x, 1, axis=1)         # value at flat p-1 == x[h, w-1]
    bases = (
        _sel(w_first, x_east, x_west),        # kx=0: x[h, reflect(w-1)]
        x,                                    # kx=1: x[h, w]
        _sel(w_last, x_west, x_east),         # kx=2: x[h, reflect(w+1)]
    )
    # Cast MXU inputs once (bf16 on v6e/v7x if requested); accumulation is f32.
    if use_mxu and w_ref.dtype != x.dtype:
        bases = tuple(b.astype(w_ref.dtype) for b in bases)

    out = None
    for ky in range(3):                       # dy = ky - 1
        # Channel-mix the three kx taps first; the pure row shift commutes
        # with channel mixing, so it is applied once to the (Cout, P) partial.
        z = None
        for kx in range(3):
            t = _mix(w_ref[ky, kx], bases[kx], use_mxu)
            z = t if z is None else z + t
        if ky == 1:
            zs = z
        else:
            z_below = pltpu.roll(z, p - width, axis=1)   # value at p+W == z[h+1, w]
            z_above = pltpu.roll(z, width, axis=1)       # value at p-W == z[h-1, w]
            if ky == 2:                                  # dy = +1
                zs = _sel(h_last, z_above, z_below)      # reflect at bottom row
            else:                                        # dy = -1
                zs = _sel(h_first, z_below, z_above)     # reflect at top row
        out = zs if out is None else out + zs
    return out


def _make_residual_kernel(width, use_mxu):
    def kernel(x_ref, w1_ref, w2_ref, masks_ref, o_ref):
        m = masks_ref[...]                                # (4, P) f32 in {0,1}
        masks = (m[0:1, :], m[1:2, :], m[2:3, :], m[3:4, :])
        y1 = _conv3x3_reflect_flat(
            x_ref[0].astype(jnp.float32), w1_ref, masks, width, use_mxu)
        y2 = _conv3x3_reflect_flat(y1, w2_ref, masks, width, use_mxu)
        # Residual: re-read x_ref so no f32 copy of x is held across both convs.
        o_ref[0] = (x_ref[0].astype(jnp.float32) + y2).astype(o_ref.dtype)
    return kernel


# ----------------------------------------------------------------------------
# Wrapper
# ----------------------------------------------------------------------------
def residual_block_forward(x_nchw, w1_sn, w2_sn, *,
                           mxu_dtype=jnp.float32, use_mxu=None):
    """out = x + conv3x3_sn(reflect(conv3x3_sn(reflect(x)))).

    x_nchw : (N, C, H, W); w*_sn : spectral-normalized weights (C, C, 3, 3).
    mxu_dtype: MXU input dtype when the MXU path is used (bf16 recommended on
      v6e/v7x; default f32 matches the strict-numerics reference).
    """
    n, c, h, w = x_nchw.shape
    if h < 2 or w < 2:
        raise ValueError("ReflectionPad2d(1) requires H >= 2 and W >= 2.")
    p = h * w
    if use_mxu is None:
        use_mxu = c >= 32

    # Metadata-only view of contiguous NCHW: lane axis = H*W, zero HBM traffic.
    x = x_nchw.reshape(n, c, p)

    # Weight prep is tiny and weight-only; in a real model it is cached next to
    # the spectral-norm reparametrization (changes only at optimizer steps).
    def prep(wt):
        wf = jnp.transpose(wt, (2, 3, 0, 1))              # (ky, kx, Cout, Cin)
        return wf.astype(mxu_dtype if use_mxu else jnp.float32)

    w1f, w2f = prep(w1_sn), prep(w2_sn)

    # Image-border masks ({0,1} f32), resident in VMEM across grid steps.
    pos = jnp.arange(p, dtype=jnp.int32)
    col = pos % w
    row = pos // w
    masks = jnp.stack(
        [col == 0, col == w - 1, row == 0, row == h - 1]).astype(jnp.float32)

    flops = n * (2 * (2 * 9 * c * c * p) + c * p)
    bytes_accessed = (2 * n * c * p * x_nchw.dtype.itemsize
                      + (w1f.size + w2f.size) * w1f.dtype.itemsize
                      + masks.size * 4)

    out_flat = pl.pallas_call(
        _make_residual_kernel(w, use_mxu),
        out_shape=jax.ShapeDtypeStruct((n, c, p), x_nchw.dtype),
        grid_spec=pltpu.PrefetchScalarGridSpec(
            num_scalar_prefetch=0,
            grid=(n,),
            in_specs=[
                pl.BlockSpec((1, c, p), lambda i: (i, 0, 0)),
                pl.BlockSpec((3, 3, c, c), lambda i: (0, 0, 0, 0)),
                pl.BlockSpec((3, 3, c, c), lambda i: (0, 0, 0, 0)),
                pl.BlockSpec((4, p), lambda i: (0, 0)),
            ],
            out_specs=pl.BlockSpec((1, c, p), lambda i: (i, 0, 0)),
        ),
        compiler_params=pltpu.CompilerParams(
            dimension_semantics=("parallel",),       # megacore split on v7x
            vmem_limit_bytes=48 * 1024 * 1024,       # fits v7x's 64 MiB VMEM
        ),
        cost_estimate=pl.CostEstimate(
            flops=flops, transcendentals=0, bytes_accessed=bytes_accessed),
    )(x, w1f, w2f, masks)

    # TODO(synk): for large images (roughly when ~10 * C*H*W*4 bytes exceeds
    # ~48 MiB) add a row-tile grid axis: block (1, C, (tile_h + 2) * W) with a
    # 1-row halo per conv (2 rows for the fused pair), reflecting the halo
    # across the full image (rows 1 / H-2) on the first / last tile.
    return out_flat.reshape(n, c, h, w)


# ----------------------------------------------------------------------------
# Spectral norm (hoisted: computed once per weight update, not per forward)
# ----------------------------------------------------------------------------
def spectral_normalize(w, n_iter=50):
    """W / sigma_max(W) on the (out, in*kh*kw) matrix (torch spectral_norm
    reparametrization, with a converged power iteration)."""
    wm = w.reshape(w.shape[0], -1)

    def l2n(v):
        return v / (jnp.linalg.norm(v) + 1e-12)

    u0 = l2n(jax.random.normal(jax.random.PRNGKey(42), (wm.shape[0],), w.dtype))
    v0 = l2n(wm.T @ u0)

    def body(_, uv):
        u, _ = uv
        v = l2n(wm.T @ u)
        u = l2n(wm @ v)
        return (u, v)

    u, v = lax.fori_loop(0, n_iter, body, (u0, v0))
    sigma = u @ (wm @ v)
    return w / sigma


# ----------------------------------------------------------------------------
# Plain-JAX reference for correctness checks
# ----------------------------------------------------------------------------
def _ref_forward(x_nchw, w1_sn, w2_sn):
    def conv(x, wt):
        xp = jnp.pad(x, ((0, 0), (0, 0), (1, 1), (1, 1)), mode="reflect")
        return lax.conv_general_dilated(
            xp, wt, window_strides=(1, 1), padding="VALID",
            dimension_numbers=("NCHW", "OIHW", "NCHW"),
            precision=lax.Precision.HIGHEST)

    return x_nchw + conv(conv(x_nchw, w1_sn), w2_sn)


# ----------------------------------------------------------------------------
if __name__ == "__main__":
    def make_case(seed, n, c, h, w):
        kx, k1, k2 = jax.random.split(jax.random.PRNGKey(seed), 3)
        x = jax.random.normal(kx, (n, c, h, w), jnp.float32)
        fan_in = c * 9
        w1 = jax.random.normal(k1, (c, c, 3, 3), jnp.float32) / jnp.sqrt(fan_in)
        w2 = jax.random.normal(k2, (c, c, 3, 3), jnp.float32) / jnp.sqrt(fan_in)
        return x, spectral_normalize(w1), spectral_normalize(w2)

    # 1) Nominal ResidualBlock test shape (h_dim=4): small-C VPU path, exact f32.
    x, w1_sn, w2_sn = make_case(0, 2, 4, 16, 16)
    out = jax.block_until_ready(jax.jit(residual_block_forward)(x, w1_sn, w2_sn))
    ref = jax.block_until_ready(_ref_forward(x, w1_sn, w2_sn))
    assert out.shape == (2, 4, 16, 16)
    assert out.dtype == x.dtype
    assert jnp.allclose(out, ref, atol=1e-4, rtol=1e-4), "VPU-path mismatch"

    # 2) Larger channel count: MXU path, strict f32 numerics.
    x2, w1b, w2b = make_case(1, 2, 64, 8, 16)
    out2 = jax.block_until_ready(jax.jit(residual_block_forward)(x2, w1b, w2b))
    ref2 = jax.block_until_ready(_ref_forward(x2, w1b, w2b))
    assert jnp.allclose(out2, ref2, atol=1e-3, rtol=1e-3), "MXU-path mismatch"

    # 3) MXU path with bf16 MXU inputs (recommended on v6e / v7x), f32 accum.
    fwd_bf16 = jax.jit(functools.partial(residual_block_forward,
                                         mxu_dtype=jnp.bfloat16))
    out3 = jax.block_until_ready(fwd_bf16(x2, w1b, w2b))
    assert jnp.allclose(out3, ref2, atol=5e-2, rtol=5e-2), "bf16 MXU mismatch"

    print("KERNEL_OK")
</pallas_src>

<mosaic_0001>
module attributes {stable_mosaic.version = 11 : i64} {
  func.func @kernel(%arg0: i32, %arg1: memref<1x4x256xf32, #tpu.memory_space<vmem>>, %arg2: memref<3x3x4x4xf32, #tpu.memory_space<vmem>>, %arg3: memref<3x3x4x4xf32, #tpu.memory_space<vmem>>, %arg4: memref<4x256xf32, #tpu.memory_space<vmem>>, %arg5: memref<1x4x256xf32, #tpu.memory_space<vmem>>) attributes {dimension_semantics = [#tpu.dimension_semantics<parallel>], iteration_bounds = array<i64: 2>, scalar_prefetch = 0 : i64, scratch_operands = 0 : i64, tpu.core_type = #tpu.core_type<tc>, window_params = [{transform_indices = @transform_0, window_bounds = array<i64: 1, 4, 256>}, {pipeline_mode = #tpu.pipeline_mode<synchronous>, transform_indices = @transform_1, window_bounds = array<i64: 3, 3, 4, 4>}, {pipeline_mode = #tpu.pipeline_mode<synchronous>, transform_indices = @transform_2, window_bounds = array<i64: 3, 3, 4, 4>}, {pipeline_mode = #tpu.pipeline_mode<synchronous>, transform_indices = @transform_3, window_bounds = array<i64: 4, 256>}, {transform_indices = @transform_4, window_bounds = array<i64: 1, 4, 256>}]} {
    %c0 = arith.constant 0 : index
    %c0_0 = arith.constant 0 : index
    %0 = vector.load %arg4[%c0, %c0_0] : memref<4x256xf32, #tpu.memory_space<vmem>>, vector<4x256xf32>
    %1 = vector.extract_strided_slice %0 {offsets = [0, 0], sizes = [1, 256], strides = [1, 1]} : vector<4x256xf32> to vector<1x256xf32>
    %2 = vector.extract_strided_slice %0 {offsets = [1, 0], sizes = [1, 256], strides = [1, 1]} : vector<4x256xf32> to vector<1x256xf32>
    %3 = vector.extract_strided_slice %0 {offsets = [2, 0], sizes = [1, 256], strides = [1, 1]} : vector<4x256xf32> to vector<1x256xf32>
    %4 = vector.extract_strided_slice %0 {offsets = [3, 0], sizes = [1, 256], strides = [1, 1]} : vector<4x256xf32> to vector<1x256xf32>
    %c0_1 = arith.constant 0 : index
    %c0_2 = arith.constant 0 : index
    %c0_3 = arith.constant 0 : index
    %5 = vector.load %arg1[%c0_1, %c0_2, %c0_3] : memref<1x4x256xf32, #tpu.memory_space<vmem>>, vector<1x4x256xf32>
    %6 = vector.shape_cast %5 : vector<1x4x256xf32> to vector<4x256xf32>
    %c255_i32 = arith.constant 255 : i32
    %7 = tpu.dynamic_rotate %6 by %c255_i32 dim 1 : vector<4x256xf32>, i32 -> vector<4x256xf32>
    %c1_i32 = arith.constant 1 : i32
    %8 = tpu.dynamic_rotate %6 by %c1_i32 dim 1 : vector<4x256xf32>, i32 -> vector<4x256xf32>
    %9 = vector.broadcast %1 : vector<1x256xf32> to vector<4x256xf32>
    %10 = arith.mulf %9, %7 : vector<4x256xf32>
    %cst = arith.constant 1.000000e+00 : f32
    %11 = vector.broadcast %cst : f32 to vector<1x256xf32>
    %12 = arith.subf %11, %1 : vector<1x256xf32>
    %13 = vector.broadcast %12 : vector<1x256xf32> to vector<4x256xf32>
    %14 = arith.mulf %13, %8 : vector<4x256xf32>
    %15 = arith.addf %10, %14 : vector<4x256xf32>
    %16 = vector.broadcast %2 : vector<1x256xf32> to vector<4x256xf32>
    %17 = arith.mulf %16, %8 : vector<4x256xf32>
    %cst_4 = arith.constant 1.000000e+00 : f32
    %18 = vector.broadcast %cst_4 : f32 to vector<1x256xf32>
    %19 = arith.subf %18, %2 : vector<1x256xf32>
    %20 = vector.broadcast %19 : vector<1x256xf32> to vector<4x256xf32>
    %21 = arith.mulf %20, %7 : vector<4x256xf32>
    %22 = arith.addf %17, %21 : vector<4x256xf32>
    %c0_5 = arith.constant 0 : index
    %c0_6 = arith.constant 0 : index
    %c0_7 = arith.constant 0 : index
    %c0_8 = arith.constant 0 : index
    %23 = vector.load %arg2[%c0_5, %c0_6, %c0_7, %c0_8] : memref<3x3x4x4xf32, #tpu.memory_space<vmem>>, vector<1x1x4x4xf32>
    %24 = vector.shape_cast %23 : vector<1x1x4x4xf32> to vector<4x4xf32>
    %25 = vector.extract_strided_slice %24 {offsets = [0, 0], sizes = [4, 1], strides = [1, 1]} : vector<4x4xf32> to vector<4x1xf32>
    %26 = vector.extract_strided_slice %15 {offsets = [0, 0], sizes = [1, 256], strides = [1, 1]} : vector<4x256xf32> to vector<1x256xf32>
    %27 = vector.broadcast %25 : vector<4x1xf32> to vector<4x256xf32>
    %28 = vector.broadcast %26 : vector<1x256xf32> to vector<4x256xf32>
    %29 = arith.mulf %27, %28 : vector<4x256xf32>
    %30 = vector.extract_strided_slice %24 {offsets = [0, 1], sizes = [4, 1], strides = [1, 1]} : vector<4x4xf32> to vector<4x1xf32>
    %31 = vector.extract_strided_slice %15 {offsets = [1, 0], sizes = [1, 256], strides = [1, 1]} : vector<4x256xf32> to vector<1x256xf32>
    %32 = vector.broadcast %30 : vector<4x1xf32> to vector<4x256xf32>
    %33 = vector.broadcast %31 : vector<1x256xf32> to vector<4x256xf32>
    %34 = arith.mulf %32, %33 : vector<4x256xf32>
    %35 = arith.addf %29, %34 : vector<4x256xf32>
    %36 = vector.extract_strided_slice %24 {offsets = [0, 2], sizes = [4, 1], strides = [1, 1]} : vector<4x4xf32> to vector<4x1xf32>
    %37 = vector.extract_strided_slice %15 {offsets = [2, 0], sizes = [1, 256], strides = [1, 1]} : vector<4x256xf32> to vector<1x256xf32>
    %38 = vector.broadcast %36 : vector<4x1xf32> to vector<4x256xf32>
    %39 = vector.broadcast %37 : vector<1x256xf32> to vector<4x256xf32>
    %40 = arith.mulf %38, %39 : vector<4x256xf32>
    %41 = arith.addf %35, %40 : vector<4x256xf32>
    %42 = vector.extract_strided_slice %24 {offsets = [0, 3], sizes = [4, 1], strides = [1, 1]} : vector<4x4xf32> to vector<4x1xf32>
    %43 = vector.extract_strided_slice %15 {offsets = [3, 0], sizes = [1, 256], strides = [1, 1]} : vector<4x256xf32> to vector<1x256xf32>
    %44 = vector.broadcast %42 : vector<4x1xf32> to vector<4x256xf32>
    %45 = vector.broadcast %43 : vector<1x256xf32> to vector<4x256xf32>
    %46 = arith.mulf %44, %45 : vector<4x256xf32>
    %47 = arith.addf %41, %46 : vector<4x256xf32>
    %c0_9 = arith.constant 0 : index
    %c1 = arith.constant 1 : index
    %c0_10 = arith.constant 0 : index
    %c0_11 = arith.constant 0 : index
    %48 = vector.load %arg2[%c0_9, %c1, %c0_10, %c0_11] : memref<3x3x4x4xf32, #tpu.memory_space<vmem>>, vector<1x1x4x4xf32>
    %49 = vector.shape_cast %48 : vector<1x1x4x4xf32> to vector<4x4xf32>
    %50 = vector.extract_strided_slice %49 {offsets = [0, 0], sizes = [4, 1], strides = [1, 1]} : vector<4x4xf32> to vector<4x1xf32>
    %51 = vector.extract_strided_slice %6 {offsets = [0, 0], sizes = [1, 256], strides = [1, 1]} : vector<4x256xf32> to vector<1x256xf32>
    %52 = vector.broadcast %50 : vector<4x1xf32> to vector<4x256xf32>
    %53 = vector.broadcast %51 : vector<1x256xf32> to vector<4x256xf32>
    %54 = arith.mulf %52, %53 : vector<4x256xf32>
    %55 = vector.extract_strided_slice %49 {offsets = [0, 1], sizes = [4, 1], strides = [1, 1]} : vector<4x4xf32> to vector<4x1xf32>
    %56 = vector.extract_strided_slice %6 {offsets = [1, 0], sizes = [1, 256], strides = [1, 1]} : vector<4x256xf32> to vector<1x256xf32>
    %57 = vector.broadcast %55 : vector<4x1xf32> to vector<4x256xf32>
    %58 = vector.broadcast %56 : vector<1x256xf32> to vector<4x256xf32>
    %59 = arith.mulf %57, %58 : vector<4x256xf32>
    %60 = arith.addf %54, %59 : vector<4x256xf32>
    %61 = vector.extract_strided_slice %49 {offsets = [0, 2], sizes = [4, 1], strides = [1, 1]} : vector<4x4xf32> to vector<4x1xf32>
    %62 = vector.extract_strided_slice %6 {offsets = [2, 0], sizes = [1, 256], strides = [1, 1]} : vector<4x256xf32> to vector<1x256xf32>
    %63 = vector.broadcast %61 : vector<4x1xf32> to vector<4x256xf32>
    %64 = vector.broadcast %62 : vector<1x256xf32> to vector<4x256xf32>
    %65 = arith.mulf %63, %64 : vector<4x256xf32>
    %66 = arith.addf %60, %65 : vector<4x256xf32>
    %67 = vector.extract_strided_slice %49 {offsets = [0, 3], sizes = [4, 1], strides = [1, 1]} : vector<4x4xf32> to vector<4x1xf32>
    %68 = vector.extract_strided_slice %6 {offsets = [3, 0], sizes = [1, 256], strides = [1, 1]} : vector<4x256xf32> to vector<1x256xf32>
    %69 = vector.broadcast %67 : vector<4x1xf32> to vector<4x256xf32>
    %70 = vector.broadcast %68 : vector<1x256xf32> to vector<4x256xf32>
    %71 = arith.mulf %69, %70 : vector<4x256xf32>
    %72 = arith.addf %66, %71 : vector<4x256xf32>
    %73 = arith.addf %47, %72 : vector<4x256xf32>
    %c0_12 = arith.constant 0 : index
    %c2 = arith.constant 2 : index
    %c0_13 = arith.constant 0 : index
    %c0_14 = arith.constant 0 : index
    %74 = vector.load %arg2[%c0_12, %c2, %c0_13, %c0_14] : memref<3x3x4x4xf32, #tpu.memory_space<vmem>>, vector<1x1x4x4xf32>
    %75 = vector.shape_cast %74 : vector<1x1x4x4xf32> to vector<4x4xf32>
    %76 = vector.extract_strided_slice %75 {offsets = [0, 0], sizes = [4, 1], strides = [1, 1]} : vector<4x4xf32> to vector<4x1xf32>
    %77 = vector.extract_strided_slice %22 {offsets = [0, 0], sizes = [1, 256], strides = [1, 1]} : vector<4x256xf32> to vector<1x256xf32>
    %78 = vector.broadcast %76 : vector<4x1xf32> to vector<4x256xf32>
    %79 = vector.broadcast %77 : vector<1x256xf32> to vector<4x256xf32>
    %80 = arith.mulf %78, %79 : vector<4x256xf32>
    %81 = vector.extract_strided_slice %75 {offsets = [0, 1], sizes = [4, 1], strides = [1, 1]} : vector<4x4xf32> to vector<4x1xf32>
    %82 = vector.extract_strided_slice %22 {offsets = [1, 0], sizes = [1, 256], strides = [1, 1]} : vector<4x256xf32> to vector<1x256xf32>
    %83 = vector.broadcast %81 : vector<4x1xf32> to vector<4x256xf32>
    %84 = vector.broadcast %82 : vector<1x256xf32> to vector<4x256xf32>
    %85 = arith.mulf %83, %84 : vector<4x256xf32>
    %86 = arith.addf %80, %85 : vector<4x256xf32>
    %87 = vector.extract_strided_slice %75 {offsets = [0, 2], sizes = [4, 1], strides = [1, 1]} : vector<4x4xf32> to vector<4x1xf32>
    %88 = vector.extract_strided_slice %22 {offsets = [2, 0], sizes = [1, 256], strides = [1, 1]} : vector<4x256xf32> to vector<1x256xf32>
    %89 = vector.broadcast %87 : vector<4x1xf32> to vector<4x256xf32>
    %90 = vector.broadcast %88 : vector<1x256xf32> to vector<4x256xf32>
    %91 = arith.mulf %89, %90 : vector<4x256xf32>
    %92 = arith.addf %86, %91 : vector<4x256xf32>
    %93 = vector.extract_strided_slice %75 {offsets = [0, 3], sizes = [4, 1], strides = [1, 1]} : vector<4x4xf32> to vector<4x1xf32>
    %94 = vector.extract_strided_slice %22 {offsets = [3, 0], sizes = [1, 256], strides = [1, 1]} : vector<4x256xf32> to vector<1x256xf32>
    %95 = vector.broadcast %93 : vector<4x1xf32> to vector<4x256xf32>
    %96 = vector.broadcast %94 : vector<1x256xf32> to vector<4x256xf32>
    %97 = arith.mulf %95, %96 : vector<4x256xf32>
    %98 = arith.addf %92, %97 : vector<4x256xf32>
    %99 = arith.addf %73, %98 : vector<4x256xf32>
    %c240_i32 = arith.constant 240 : i32
    %100 = tpu.dynamic_rotate %99 by %c240_i32 dim 1 : vector<4x256xf32>, i32 -> vector<4x256xf32>
    %c16_i32 = arith.constant 16 : i32
    %101 = tpu.dynamic_rotate %99 by %c16_i32 dim 1 : vector<4x256xf32>, i32 -> vector<4x256xf32>
    %102 = vector.broadcast %3 : vector<1x256xf32> to vector<4x256xf32>
    %103 = arith.mulf %102, %100 : vector<4x256xf32>
    %cst_15 = arith.constant 1.000000e+00 : f32
    %104 = vector.broadcast %cst_15 : f32 to vector<1x256xf32>
    %105 = arith.subf %104, %3 : vector<1x256xf32>
    %106 = vector.broadcast %105 : vector<1x256xf32> to vector<4x256xf32>
    %107 = arith.mulf %106, %101 : vector<4x256xf32>
    %108 = arith.addf %103, %107 : vector<4x256xf32>
    %c1_16 = arith.constant 1 : index
    %c0_17 = arith.constant 0 : index
    %c0_18 = arith.constant 0 : index
    %c0_19 = arith.constant 0 : index
    %109 = vector.load %arg2[%c1_16, %c0_17, %c0_18, %c0_19] : memref<3x3x4x4xf32, #tpu.memory_space<vmem>>, vector<1x1x4x4xf32>
    %110 = vector.shape_cast %109 : vector<1x1x4x4xf32> to vector<4x4xf32>
    %111 = vector.extract_strided_slice %110 {offsets = [0, 0], sizes = [4, 1], strides = [1, 1]} : vector<4x4xf32> to vector<4x1xf32>
    %112 = vector.extract_strided_slice %15 {offsets = [0, 0], sizes = [1, 256], strides = [1, 1]} : vector<4x256xf32> to vector<1x256xf32>
    %113 = vector.broadcast %111 : vector<4x1xf32> to vector<4x256xf32>
    %114 = vector.broadcast %112 : vector<1x256xf32> to vector<4x256xf32>
    %115 = arith.mulf %113, %114 : vector<4x256xf32>
    %116 = vector.extract_strided_slice %110 {offsets = [0, 1], sizes = [4, 1], strides = [1, 1]} : vector<4x4xf32> to vector<4x1xf32>
    %117 = vector.extract_strided_slice %15 {offsets = [1, 0], sizes = [1, 256], strides = [1, 1]} : vector<4x256xf32> to vector<1x256xf32>
    %118 = vector.broadcast %116 : vector<4x1xf32> to vector<4x256xf32>
    %119 = vector.broadcast %117 : vector<1x256xf32> to vector<4x256xf32>
    %120 = arith.mulf %118, %119 : vector<4x256xf32>
    %121 = arith.addf %115, %120 : vector<4x256xf32>
    %122 = vector.extract_strided_slice %110 {offsets = [0, 2], sizes = [4, 1], strides = [1, 1]} : vector<4x4xf32> to vector<4x1xf32>
    %123 = vector.extract_strided_slice %15 {offsets = [2, 0], sizes = [1, 256], strides = [1, 1]} : vector<4x256xf32> to vector<1x256xf32>
    %124 = vector.broadcast %122 : vector<4x1xf32> to vector<4x256xf32>
    %125 = vector.broadcast %123 : vector<1x256xf32> to vector<4x256xf32>
    %126 = arith.mulf %124, %125 : vector<4x256xf32>
    %127 = arith.addf %121, %126 : vector<4x256xf32>
    %128 = vector.extract_strided_slice %110 {offsets = [0, 3], sizes = [4, 1], strides = [1, 1]} : vector<4x4xf32> to vector<4x1xf32>
    %129 = vector.extract_strided_slice %15 {offsets = [3, 0], sizes = [1, 256], strides = [1, 1]} : vector<4x256xf32> to vector<1x256xf32>
    %130 = vector.broadcast %128 : vector<4x1xf32> to vector<4x256xf32>
    %131 = vector.broadcast %129 : vector<1x256xf32> to vector<4x256xf32>
    %132 = arith.mulf %130, %131 : vector<4x256xf32>
    %133 = arith.addf %127, %132 : vector<4x256xf32>
    %c1_20 = arith.constant 1 : index
    %c1_21 = arith.constant 1 : index
    %c0_22 = arith.constant 0 : index
    %c0_23 = arith.constant 0 : index
    %134 = vector.load %arg2[%c1_20, %c1_21, %c0_22, %c0_23] : memref<3x3x4x4xf32, #tpu.memory_space<vmem>>, vector<1x1x4x4xf32>
    %135 = vector.shape_cast %134 : vector<1x1x4x4xf32> to vector<4x4xf32>
    %136 = vector.extract_strided_slice %135 {offsets = [0, 0], sizes = [4, 1], strides = [1, 1]} : vector<4x4xf32> to vector<4x1xf32>
    %137 = vector.extract_strided_slice %6 {offsets = [0, 0], sizes = [1, 256], strides = [1, 1]} : vector<4x256xf32> to vector<1x256xf32>
    %138 = vector.broadcast %136 : vector<4x1xf32> to vector<4x256xf32>
    %139 = vector.broadcast %137 : vector<1x256xf32> to vector<4x256xf32>
    %140 = arith.mulf %138, %139 : vector<4x256xf32>
    %141 = vector.extract_strided_slice %135 {offsets = [0, 1], sizes = [4, 1], strides = [1, 1]} : vector<4x4xf32> to vector<4x1xf32>
    %142 = vector.extract_strided_slice %6 {offsets = [1, 0], sizes = [1, 256], strides = [1, 1]} : vector<4x256xf32> to vector<1x256xf32>
    %143 = vector.broadcast %141 : vector<4x1xf32> to vector<4x256xf32>
    %144 = vector.broadcast %142 : vector<1x256xf32> to vector<4x256xf32>
    %145 = arith.mulf %143, %144 : vector<4x256xf32>
    %146 = arith.addf %140, %145 : vector<4x256xf32>
    %147 = vector.extract_strided_slice %135 {offsets = [0, 2], sizes = [4, 1], strides = [1, 1]} : vector<4x4xf32> to vector<4x1xf32>
    %148 = vector.extract_strided_slice %6 {offsets = [2, 0], sizes = [1, 256], strides = [1, 1]} : vector<4x256xf32> to vector<1x256xf32>
    %149 = vector.broadcast %147 : vector<4x1xf32> to vector<4x256xf32>
    %150 = vector.broadcast %148 : vector<1x256xf32> to vector<4x256xf32>
    %151 = arith.mulf %149, %150 : vector<4x256xf32>
    %152 = arith.addf %146, %151 : vector<4x256xf32>
    %153 = vector.extract_strided_slice %135 {offsets = [0, 3], sizes = [4, 1], strides = [1, 1]} : vector<4x4xf32> to vector<4x1xf32>
    %154 = vector.extract_strided_slice %6 {offsets = [3, 0], sizes = [1, 256], strides = [1, 1]} : vector<4x256xf32> to vector<1x256xf32>
    %155 = vector.broadcast %153 : vector<4x1xf32> to vector<4x256xf32>
    %156 = vector.broadcast %154 : vector<1x256xf32> to vector<4x256xf32>
    %157 = arith.mulf %155, %156 : vector<4x256xf32>
    %158 = arith.addf %152, %157 : vector<4x256xf32>
    %159 = arith.addf %133, %158 : vector<4x256xf32>
    %c1_24 = arith.constant 1 : index
    %c2_25 = arith.constant 2 : index
    %c0_26 = arith.constant 0 : index
    %c0_27 = arith.constant 0 : index
    %160 = vector.load %arg2[%c1_24, %c2_25, %c0_26, %c0_27] : memref<3x3x4x4xf32, #tpu.memory_space<vmem>>, vector<1x1x4x4xf32>
    %161 = vector.shape_cast %160 : vector<1x1x4x4xf32> to vector<4x4xf32>
    %162 = vector.extract_strided_slice %161 {offsets = [0, 0], sizes = [4, 1], strides = [1, 1]} : vector<4x4xf32> to vector<4x1xf32>
    %163 = vector.extract_strided_slice %22 {offsets = [0, 0], sizes = [1, 256], strides = [1, 1]} : vector<4x256xf32> to vector<1x256xf32>
    %164 = vector.broadcast %162 : vector<4x1xf32> to vector<4x256xf32>
    %165 = vector.broadcast %163 : vector<1x256xf32> to vector<4x256xf32>
    %166 = arith.mulf %164, %165 : vector<4x256xf32>
    %167 = vector.extract_strided_slice %161 {offsets = [0, 1], sizes = [4, 1], strides = [1, 1]} : vector<4x4xf32> to vector<4x1xf32>
    %168 = vector.extract_strided_slice %22 {offsets = [1, 0], sizes = [1, 256], strides = [1, 1]} : vector<4x256xf32> to vector<1x256xf32>
    %169 = vector.broadcast %167 : vector<4x1xf32> to vector<4x256xf32>
    %170 = vector.broadcast %168 : vector<1x256xf32> to vector<4x256xf32>
    %171 = arith.mulf %169, %170 : vector<4x256xf32>
    %172 = arith.addf %166, %171 : vector<4x256xf32>
    %173 = vector.extract_strided_slice %161 {offsets = [0, 2], sizes = [4, 1], strides = [1, 1]} : vector<4x4xf32> to vector<4x1xf32>
    %174 = vector.extract_strided_slice %22 {offsets = [2, 0], sizes = [1, 256], strides = [1, 1]} : vector<4x256xf32> to vector<1x256xf32>
    %175 = vector.broadcast %173 : vector<4x1xf32> to vector<4x256xf32>
    %176 = vector.broadcast %174 : vector<1x256xf32> to vector<4x256xf32>
    %177 = arith.mulf %175, %176 : vector<4x256xf32>
    %178 = arith.addf %172, %177 : vector<4x256xf32>
    %179 = vector.extract_strided_slice %161 {offsets = [0, 3], sizes = [4, 1], strides = [1, 1]} : vector<4x4xf32> to vector<4x1xf32>
    %180 = vector.extract_strided_slice %22 {offsets = [3, 0], sizes = [1, 256], strides = [1, 1]} : vector<4x256xf32> to vector<1x256xf32>
    %181 = vector.broadcast %179 : vector<4x1xf32> to vector<4x256xf32>
    %182 = vector.broadcast %180 : vector<1x256xf32> to vector<4x256xf32>
    %183 = arith.mulf %181, %182 : vector<4x256xf32>
    %184 = arith.addf %178, %183 : vector<4x256xf32>
    %185 = arith.addf %159, %184 : vector<4x256xf32>
    %186 = arith.addf %108, %185 : vector<4x256xf32>
    %c2_28 = arith.constant 2 : index
    %c0_29 = arith.constant 0 : index
    %c0_30 = arith.constant 0 : index
    %c0_31 = arith.constant 0 : index
    %187 = vector.load %arg2[%c2_28, %c0_29, %c0_30, %c0_31] : memref<3x3x4x4xf32, #tpu.memory_space<vmem>>, vector<1x1x4x4xf32>
    %188 = vector.shape_cast %187 : vector<1x1x4x4xf32> to vector<4x4xf32>
    %189 = vector.extract_strided_slice %188 {offsets = [0, 0], sizes = [4, 1], strides = [1, 1]} : vector<4x4xf32> to vector<4x1xf32>
    %190 = vector.extract_strided_slice %15 {offsets = [0, 0], sizes = [1, 256], strides = [1, 1]} : vector<4x256xf32> to vector<1x256xf32>
    %191 = vector.broadcast %189 : vector<4x1xf32> to vector<4x256xf32>
    %192 = vector.broadcast %190 : vector<1x256xf32> to vector<4x256xf32>
    %193 = arith.mulf %191, %192 : vector<4x256xf32>
    %194 = vector.extract_strided_slice %188 {offsets = [0, 1], sizes = [4, 1], strides = [1, 1]} : vector<4x4xf32> to vector<4x1xf32>
    %195 = vector.extract_strided_slice %15 {offsets = [1, 0], sizes = [1, 256], strides = [1, 1]} : vector<4x256xf32> to vector<1x256xf32>
    %196 = vector.broadcast %194 : vector<4x1xf32> to vector<4x256xf32>
    %197 = vector.broadcast %195 : vector<1x256xf32> to vector<4x256xf32>
    %198 = arith.mulf %196, %197 : vector<4x256xf32>
    %199 = arith.addf %193, %198 : vector<4x256xf32>
    %200 = vector.extract_strided_slice %188 {offsets = [0, 2], sizes = [4, 1], strides = [1, 1]} : vector<4x4xf32> to vector<4x1xf32>
    %201 = vector.extract_strided_slice %15 {offsets = [2, 0], sizes = [1, 256], strides = [1, 1]} : vector<4x256xf32> to vector<1x256xf32>
    %202 = vector.broadcast %200 : vector<4x1xf32> to vector<4x256xf32>
    %203 = vector.broadcast %201 : vector<1x256xf32> to vector<4x256xf32>
    %204 = arith.mulf %202, %203 : vector<4x256xf32>
    %205 = arith.addf %199, %204 : vector<4x256xf32>
    %206 = vector.extract_strided_slice %188 {offsets = [0, 3], sizes = [4, 1], strides = [1, 1]} : vector<4x4xf32> to vector<4x1xf32>
    %207 = vector.extract_strided_slice %15 {offsets = [3, 0], sizes = [1, 256], strides = [1, 1]} : vector<4x256xf32> to vector<1x256xf32>
    %208 = vector.broadcast %206 : vector<4x1xf32> to vector<4x256xf32>
    %209 = vector.broadcast %207 : vector<1x256xf32> to vector<4x256xf32>
    %210 = arith.mulf %208, %209 : vector<4x256xf32>
    %211 = arith.addf %205, %210 : vector<4x256xf32>
    %c2_32 = arith.constant 2 : index
    %c1_33 = arith.constant 1 : index
    %c0_34 = arith.constant 0 : index
    %c0_35 = arith.constant 0 : index
    %212 = vector.load %arg2[%c2_32, %c1_33, %c0_34, %c0_35] : memref<3x3x4x4xf32, #tpu.memory_space<vmem>>, vector<1x1x4x4xf32>
    %213 = vector.shape_cast %212 : vector<1x1x4x4xf32> to vector<4x4xf32>
    %214 = vector.extract_strided_slice %213 {offsets = [0, 0], sizes = [4, 1], strides = [1, 1]} : vector<4x4xf32> to vector<4x1xf32>
    %215 = vector.extract_strided_slice %6 {offsets = [0, 0], sizes = [1, 256], strides = [1, 1]} : vector<4x256xf32> to vector<1x256xf32>
    %216 = vector.broadcast %214 : vector<4x1xf32> to vector<4x256xf32>
    %217 = vector.broadcast %215 : vector<1x256xf32> to vector<4x256xf32>
    %218 = arith.mulf %216, %217 : vector<4x256xf32>
    %219 = vector.extract_strided_slice %213 {offsets = [0, 1], sizes = [4, 1], strides = [1, 1]} : vector<4x4xf32> to vector<4x1xf32>
    %220 = vector.extract_strided_slice %6 {offsets = [1, 0], sizes = [1, 256], strides = [1, 1]} : vector<4x256xf32> to vector<1x256xf32>
    %221 = vector.broadcast %219 : vector<4x1xf32> to vector<4x256xf32>
    %222 = vector.broadcast %220 : vector<1x256xf32> to vector<4x256xf32>
    %223 = arith.mulf %221, %222 : vector<4x256xf32>
    %224 = arith.addf %218, %223 : vector<4x256xf32>
    %225 = vector.extract_strided_slice %213 {offsets = [0, 2], sizes = [4, 1], strides = [1, 1]} : vector<4x4xf32> to vector<4x1xf32>
    %226 = vector.extract_strided_slice %6 {offsets = [2, 0], sizes = [1, 256], strides = [1, 1]} : vector<4x256xf32> to vector<1x256xf32>
    %227 = vector.broadcast %225 : vector<4x1xf32> to vector<4x256xf32>
    %228 = vector.broadcast %226 : vector<1x256xf32> to vector<4x256xf32>
    %229 = arith.mulf %227, %228 : vector<4x256xf32>
    %230 = arith.addf %224, %229 : vector<4x256xf32>
    %231 = vector.extract_strided_slice %213 {offsets = [0, 3], sizes = [4, 1], strides = [1, 1]} : vector<4x4xf32> to vector<4x1xf32>
    %232 = vector.extract_strided_slice %6 {offsets = [3, 0], sizes = [1, 256], strides = [1, 1]} : vector<4x256xf32> to vector<1x256xf32>
    %233 = vector.broadcast %231 : vector<4x1xf32> to vector<4x256xf32>
    %234 = vector.broadcast %232 : vector<1x256xf32> to vector<4x256xf32>
    %235 = arith.mulf %233, %234 : vector<4x256xf32>
    %236 = arith.addf %230, %235 : vector<4x256xf32>
    %237 = arith.addf %211, %236 : vector<4x256xf32>
    %c2_36 = arith.constant 2 : index
    %c2_37 = arith.constant 2 : index
    %c0_38 = arith.constant 0 : index
    %c0_39 = arith.constant 0 : index
    %238 = vector.load %arg2[%c2_36, %c2_37, %c0_38, %c0_39] : memref<3x3x4x4xf32, #tpu.memory_space<vmem>>, vector<1x1x4x4xf32>
    %239 = vector.shape_cast %238 : vector<1x1x4x4xf32> to vector<4x4xf32>
    %240 = vector.extract_strided_slice %239 {offsets = [0, 0], sizes = [4, 1], strides = [1, 1]} : vector<4x4xf32> to vector<4x1xf32>
    %241 = vector.extract_strided_slice %22 {offsets = [0, 0], sizes = [1, 256], strides = [1, 1]} : vector<4x256xf32> to vector<1x256xf32>
    %242 = vector.broadcast %240 : vector<4x1xf32> to vector<4x256xf32>
    %243 = vector.broadcast %241 : vector<1x256xf32> to vector<4x256xf32>
    %244 = arith.mulf %242, %243 : vector<4x256xf32>
    %245 = vector.extract_strided_slice %239 {offsets = [0, 1], sizes = [4, 1], strides = [1, 1]} : vector<4x4xf32> to vector<4x1xf32>
    %246 = vector.extract_strided_slice %22 {offsets = [1, 0], sizes = [1, 256], strides = [1, 1]} : vector<4x256xf32> to vector<1x256xf32>
    %247 = vector.broadcast %245 : vector<4x1xf32> to vector<4x256xf32>
    %248 = vector.broadcast %246 : vector<1x256xf32> to vector<4x256xf32>
    %249 = arith.mulf %247, %248 : vector<4x256xf32>
    %250 = arith.addf %244, %249 : vector<4x256xf32>
    %251 = vector.extract_strided_slice %239 {offsets = [0, 2], sizes = [4, 1], strides = [1, 1]} : vector<4x4xf32> to vector<4x1xf32>
    %252 = vector.extract_strided_slice %22 {offsets = [2, 0], sizes = [1, 256], strides = [1, 1]} : vector<4x256xf32> to vector<1x256xf32>
    %253 = vector.broadcast %251 : vector<4x1xf32> to vector<4x256xf32>
    %254 = vector.broadcast %252 : vector<1x256xf32> to vector<4x256xf32>
    %255 = arith.mulf %253, %254 : vector<4x256xf32>
    %256 = arith.addf %250, %255 : vector<4x256xf32>
    %257 = vector.extract_strided_slice %239 {offsets = [0, 3], sizes = [4, 1], strides = [1, 1]} : vector<4x4xf32> to vector<4x1xf32>
    %258 = vector.extract_strided_slice %22 {offsets = [3, 0], sizes = [1, 256], strides = [1, 1]} : vector<4x256xf32> to vector<1x256xf32>
    %259 = vector.broadcast %257 : vector<4x1xf32> to vector<4x256xf32>
    %260 = vector.broadcast %258 : vector<1x256xf32> to vector<4x256xf32>
    %261 = arith.mulf %259, %260 : vector<4x256xf32>
    %262 = arith.addf %256, %261 : vector<4x256xf32>
    %263 = arith.addf %237, %262 : vector<4x256xf32>
    %c240_i32_40 = arith.constant 240 : i32
    %264 = tpu.dynamic_rotate %263 by %c240_i32_40 dim 1 : vector<4x256xf32>, i32 -> vector<4x256xf32>
    %c16_i32_41 = arith.constant 16 : i32
    %265 = tpu.dynamic_rotate %263 by %c16_i32_41 dim 1 : vector<4x256xf32>, i32 -> vector<4x256xf32>
    %266 = vector.broadcast %4 : vector<1x256xf32> to vector<4x256xf32>
    %267 = arith.mulf %266, %265 : vector<4x256xf32>
    %cst_42 = arith.constant 1.000000e+00 : f32
    %268 = vector.broadcast %cst_42 : f32 to vector<1x256xf32>
    %269 = arith.subf %268, %4 : vector<1x256xf32>
    %270 = vector.broadcast %269 : vector<1x256xf32> to vector<4x256xf32>
    %271 = arith.mulf %270, %264 : vector<4x256xf32>
    %272 = arith.addf %267, %271 : vector<4x256xf32>
    %273 = arith.addf %186, %272 : vector<4x256xf32>
    %c255_i32_43 = arith.constant 255 : i32
    %274 = tpu.dynamic_rotate %273 by %c255_i32_43 dim 1 : vector<4x256xf32>, i32 -> vector<4x256xf32>
    %c1_i32_44 = arith.constant 1 : i32
    %275 = tpu.dynamic_rotate %273 by %c1_i32_44 dim 1 : vector<4x256xf32>, i32 -> vector<4x256xf32>
    %276 = vector.broadcast %1 : vector<1x256xf32> to vector<4x256xf32>
    %277 = arith.mulf %276, %274 : vector<4x256xf32>
    %cst_45 = arith.constant 1.000000e+00 : f32
    %278 = vector.broadcast %cst_45 : f32 to vector<1x256xf32>
    %279 = arith.subf %278, %1 : vector<1x256xf32>
    %280 = vector.broadcast %279 : vector<1x256xf32> to vector<4x256xf32>
    %281 = arith.mulf %280, %275 : vector<4x256xf32>
    %282 = arith.addf %277, %281 : vector<4x256xf32>
    %283 = vector.broadcast %2 : vector<1x256xf32> to vector<4x256xf32>
    %284 = arith.mulf %283, %275 : vector<4x256xf32>
    %cst_46 = arith.constant 1.000000e+00 : f32
    %285 = vector.broadcast %cst_46 : f32 to vector<1x256xf32>
    %286 = arith.subf %285, %2 : vector<1x256xf32>
    %287 = vector.broadcast %286 : vector<1x256xf32> to vector<4x256xf32>
    %288 = arith.mulf %287, %274 : vector<4x256xf32>
    %289 = arith.addf %284, %288 : vector<4x256xf32>
    %c0_47 = arith.constant 0 : index
    %c0_48 = arith.constant 0 : index
    %c0_49 = arith.constant 0 : index
    %c0_50 = arith.constant 0 : index
    %290 = vector.load %arg3[%c0_47, %c0_48, %c0_49, %c0_50] : memref<3x3x4x4xf32, #tpu.memory_space<vmem>>, vector<1x1x4x4xf32>
    %291 = vector.shape_cast %290 : vector<1x1x4x4xf32> to vector<4x4xf32>
    %292 = vector.extract_strided_slice %291 {offsets = [0, 0], sizes = [4, 1], strides = [1, 1]} : vector<4x4xf32> to vector<4x1xf32>
    %293 = vector.extract_strided_slice %282 {offsets = [0, 0], sizes = [1, 256], strides = [1, 1]} : vector<4x256xf32> to vector<1x256xf32>
    %294 = vector.broadcast %292 : vector<4x1xf32> to vector<4x256xf32>
    %295 = vector.broadcast %293 : vector<1x256xf32> to vector<4x256xf32>
    %296 = arith.mulf %294, %295 : vector<4x256xf32>
    %297 = vector.extract_strided_slice %291 {offsets = [0, 1], sizes = [4, 1], strides = [1, 1]} : vector<4x4xf32> to vector<4x1xf32>
    %298 = vector.extract_strided_slice %282 {offsets = [1, 0], sizes = [1, 256], strides = [1, 1]} : vector<4x256xf32> to vector<1x256xf32>
    %299 = vector.broadcast %297 : vector<4x1xf32> to vector<4x256xf32>
    %300 = vector.broadcast %298 : vector<1x256xf32> to vector<4x256xf32>
    %301 = arith.mulf %299, %300 : vector<4x256xf32>
    %302 = arith.addf %296, %301 : vector<4x256xf32>
    %303 = vector.extract_strided_slice %291 {offsets = [0, 2], sizes = [4, 1], strides = [1, 1]} : vector<4x4xf32> to vector<4x1xf32>
    %304 = vector.extract_strided_slice %282 {offsets = [2, 0], sizes = [1, 256], strides = [1, 1]} : vector<4x256xf32> to vector<1x256xf32>
    %305 = vector.broadcast %303 : vector<4x1xf32> to vector<4x256xf32>
    %306 = vector.broadcast %304 : vector<1x256xf32> to vector<4x256xf32>
    %307 = arith.mulf %305, %306 : vector<4x256xf32>
    %308 = arith.addf %302, %307 : vector<4x256xf32>
    %309 = vector.extract_strided_slice %291 {offsets = [0, 3], sizes = [4, 1], strides = [1, 1]} : vector<4x4xf32> to vector<4x1xf32>
    %310 = vector.extract_strided_slice %282 {offsets = [3, 0], sizes = [1, 256], strides = [1, 1]} : vector<4x256xf32> to vector<1x256xf32>
    %311 = vector.broadcast %309 : vector<4x1xf32> to vector<4x256xf32>
    %312 = vector.broadcast %310 : vector<1x256xf32> to vector<4x256xf32>
    %313 = arith.mulf %311, %312 : vector<4x256xf32>
    %314 = arith.addf %308, %313 : vector<4x256xf32>
    %c0_51 = arith.constant 0 : index
    %c1_52 = arith.constant 1 : index
    %c0_53 = arith.constant 0 : index
    %c0_54 = arith.constant 0 : index
    %315 = vector.load %arg3[%c0_51, %c1_52, %c0_53, %c0_54] : memref<3x3x4x4xf32, #tpu.memory_space<vmem>>, vector<1x1x4x4xf32>
    %316 = vector.shape_cast %315 : vector<1x1x4x4xf32> to vector<4x4xf32>
    %317 = vector.extract_strided_slice %316 {offsets = [0, 0], sizes = [4, 1], strides = [1, 1]} : vector<4x4xf32> to vector<4x1xf32>
    %318 = vector.extract_strided_slice %273 {offsets = [0, 0], sizes = [1, 256], strides = [1, 1]} : vector<4x256xf32> to vector<1x256xf32>
    %319 = vector.broadcast %317 : vector<4x1xf32> to vector<4x256xf32>
    %320 = vector.broadcast %318 : vector<1x256xf32> to vector<4x256xf32>
    %321 = arith.mulf %319, %320 : vector<4x256xf32>
    %322 = vector.extract_strided_slice %316 {offsets = [0, 1], sizes = [4, 1], strides = [1, 1]} : vector<4x4xf32> to vector<4x1xf32>
    %323 = vector.extract_strided_slice %273 {offsets = [1, 0], sizes = [1, 256], strides = [1, 1]} : vector<4x256xf32> to vector<1x256xf32>
    %324 = vector.broadcast %322 : vector<4x1xf32> to vector<4x256xf32>
    %325 = vector.broadcast %323 : vector<1x256xf32> to vector<4x256xf32>
    %326 = arith.mulf %324, %325 : vector<4x256xf32>
    %327 = arith.addf %321, %326 : vector<4x256xf32>
    %328 = vector.extract_strided_slice %316 {offsets = [0, 2], sizes = [4, 1], strides = [1, 1]} : vector<4x4xf32> to vector<4x1xf32>
    %329 = vector.extract_strided_slice %273 {offsets = [2, 0], sizes = [1, 256], strides = [1, 1]} : vector<4x256xf32> to vector<1x256xf32>
    %330 = vector.broadcast %328 : vector<4x1xf32> to vector<4x256xf32>
    %331 = vector.broadcast %329 : vector<1x256xf32> to vector<4x256xf32>
    %332 = arith.mulf %330, %331 : vector<4x256xf32>
    %333 = arith.addf %327, %332 : vector<4x256xf32>
    %334 = vector.extract_strided_slice %316 {offsets = [0, 3], sizes = [4, 1], strides = [1, 1]} : vector<4x4xf32> to vector<4x1xf32>
    %335 = vector.extract_strided_slice %273 {offsets = [3, 0], sizes = [1, 256], strides = [1, 1]} : vector<4x256xf32> to vector<1x256xf32>
    %336 = vector.broadcast %334 : vector<4x1xf32> to vector<4x256xf32>
    %337 = vector.broadcast %335 : vector<1x256xf32> to vector<4x256xf32>
    %338 = arith.mulf %336, %337 : vector<4x256xf32>
    %339 = arith.addf %333, %338 : vector<4x256xf32>
    %340 = arith.addf %314, %339 : vector<4x256xf32>
    %c0_55 = arith.constant 0 : index
    %c2_56 = arith.constant 2 : index
    %c0_57 = arith.constant 0 : index
    %c0_58 = arith.constant 0 : index
    %341 = vector.load %arg3[%c0_55, %c2_56, %c0_57, %c0_58] : memref<3x3x4x4xf32, #tpu.memory_space<vmem>>, vector<1x1x4x4xf32>
    %342 = vector.shape_cast %341 : vector<1x1x4x4xf32> to vector<4x4xf32>
    %343 = vector.extract_strided_slice %342 {offsets = [0, 0], sizes = [4, 1], strides = [1, 1]} : vector<4x4xf32> to vector<4x1xf32>
    %344 = vector.extract_strided_slice %289 {offsets = [0, 0], sizes = [1, 256], strides = [1, 1]} : vector<4x256xf32> to vector<1x256xf32>
    %345 = vector.broadcast %343 : vector<4x1xf32> to vector<4x256xf32>
    %346 = vector.broadcast %344 : vector<1x256xf32> to vector<4x256xf32>
    %347 = arith.mulf %345, %346 : vector<4x256xf32>
    %348 = vector.extract_strided_slice %342 {offsets = [0, 1], sizes = [4, 1], strides = [1, 1]} : vector<4x4xf32> to vector<4x1xf32>
    %349 = vector.extract_strided_slice %289 {offsets = [1, 0], sizes = [1, 256], strides = [1, 1]} : vector<4x256xf32> to vector<1x256xf32>
    %350 = vector.broadcast %348 : vector<4x1xf32> to vector<4x256xf32>
    %351 = vector.broadcast %349 : vector<1x256xf32> to vector<4x256xf32>
    %352 = arith.mulf %350, %351 : vector<4x256xf32>
    %353 = arith.addf %347, %352 : vector<4x256xf32>
    %354 = vector.extract_strided_slice %342 {offsets = [0, 2], sizes = [4, 1], strides = [1, 1]} : vector<4x4xf32> to vector<4x1xf32>
    %355 = vector.extract_strided_slice %289 {offsets = [2, 0], sizes = [1, 256], strides = [1, 1]} : vector<4x256xf32> to vector<1x256xf32>
    %356 = vector.broadcast %354 : vector<4x1xf32> to vector<4x256xf32>
    %357 = vector.broadcast %355 : vector<1x256xf32> to vector<4x256xf32>
    %358 = arith.mulf %356, %357 : vector<4x256xf32>
    %359 = arith.addf %353, %358 : vector<4x256xf32>
    %360 = vector.extract_strided_slice %342 {offsets = [0, 3], sizes = [4, 1], strides = [1, 1]} : vector<4x4xf32> to vector<4x1xf32>
    %361 = vector.extract_strided_slice %289 {offsets = [3, 0], sizes = [1, 256], strides = [1, 1]} : vector<4x256xf32> to vector<1x256xf32>
    %362 = vector.broadcast %360 : vector<4x1xf32> to vector<4x256xf32>
    %363 = vector.broadcast %361 : vector<1x256xf32> to vector<4x256xf32>
    %364 = arith.mulf %362, %363 : vector<4x256xf32>
    %365 = arith.addf %359, %364 : vector<4x256xf32>
    %366 = arith.addf %340, %365 : vector<4x256xf32>
    %c240_i32_59 = arith.constant 240 : i32
    %367 = tpu.dynamic_rotate %366 by %c240_i32_59 dim 1 : vector<4x256xf32>, i32 -> vector<4x256xf32>
    %c16_i32_60 = arith.constant 16 : i32
    %368 = tpu.dynamic_rotate %366 by %c16_i32_60 dim 1 : vector<4x256xf32>, i32 -> vector<4x256xf32>
    %369 = vector.broadcast %3 : vector<1x256xf32> to vector<4x256xf32>
    %370 = arith.mulf %369, %367 : vector<4x256xf32>
    %cst_61 = arith.constant 1.000000e+00 : f32
    %371 = vector.broadcast %cst_61 : f32 to vector<1x256xf32>
    %372 = arith.subf %371, %3 : vector<1x256xf32>
    %373 = vector.broadcast %372 : vector<1x256xf32> to vector<4x256xf32>
    %374 = arith.mulf %373, %368 : vector<4x256xf32>
    %375 = arith.addf %370, %374 : vector<4x256xf32>
    %c1_62 = arith.constant 1 : index
    %c0_63 = arith.constant 0 : index
    %c0_64 = arith.constant 0 : index
    %c0_65 = arith.constant 0 : index
    %376 = vector.load %arg3[%c1_62, %c0_63, %c0_64, %c0_65] : memref<3x3x4x4xf32, #tpu.memory_space<vmem>>, vector<1x1x4x4xf32>
    %377 = vector.shape_cast %376 : vector<1x1x4x4xf32> to vector<4x4xf32>
    %378 = vector.extract_strided_slice %377 {offsets = [0, 0], sizes = [4, 1], strides = [1, 1]} : vector<4x4xf32> to vector<4x1xf32>
    %379 = vector.extract_strided_slice %282 {offsets = [0, 0], sizes = [1, 256], strides = [1, 1]} : vector<4x256xf32> to vector<1x256xf32>
    %380 = vector.broadcast %378 : vector<4x1xf32> to vector<4x256xf32>
    %381 = vector.broadcast %379 : vector<1x256xf32> to vector<4x256xf32>
    %382 = arith.mulf %380, %381 : vector<4x256xf32>
    %383 = vector.extract_strided_slice %377 {offsets = [0, 1], sizes = [4, 1], strides = [1, 1]} : vector<4x4xf32> to vector<4x1xf32>
    %384 = vector.extract_strided_slice %282 {offsets = [1, 0], sizes = [1, 256], strides = [1, 1]} : vector<4x256xf32> to vector<1x256xf32>
    %385 = vector.broadcast %383 : vector<4x1xf32> to vector<4x256xf32>
    %386 = vector.broadcast %384 : vector<1x256xf32> to vector<4x256xf32>
    %387 = arith.mulf %385, %386 : vector<4x256xf32>
    %388 = arith.addf %382, %387 : vector<4x256xf32>
    %389 = vector.extract_strided_slice %377 {offsets = [0, 2], sizes = [4, 1], strides = [1, 1]} : vector<4x4xf32> to vector<4x1xf32>
    %390 = vector.extract_strided_slice %282 {offsets = [2, 0], sizes = [1, 256], strides = [1, 1]} : vector<4x256xf32> to vector<1x256xf32>
    %391 = vector.broadcast %389 : vector<4x1xf32> to vector<4x256xf32>
    %392 = vector.broadcast %390 : vector<1x256xf32> to vector<4x256xf32>
    %393 = arith.mulf %391, %392 : vector<4x256xf32>
    %394 = arith.addf %388, %393 : vector<4x256xf32>
    %395 = vector.extract_strided_slice %377 {offsets = [0, 3], sizes = [4, 1], strides = [1, 1]} : vector<4x4xf32> to vector<4x1xf32>
    %396 = vector.extract_strided_slice %282 {offsets = [3, 0], sizes = [1, 256], strides = [1, 1]} : vector<4x256xf32> to vector<1x256xf32>
    %397 = vector.broadcast %395 : vector<4x1xf32> to vector<4x256xf32>
    %398 = vector.broadcast %396 : vector<1x256xf32> to vector<4x256xf32>
    %399 = arith.mulf %397, %398 : vector<4x256xf32>
    %400 = arith.addf %394, %399 : vector<4x256xf32>
    %c1_66 = arith.constant 1 : index
    %c1_67 = arith.constant 1 : index
    %c0_68 = arith.constant 0 : index
    %c0_69 = arith.constant 0 : index
    %401 = vector.load %arg3[%c1_66, %c1_67, %c0_68, %c0_69] : memref<3x3x4x4xf32, #tpu.memory_space<vmem>>, vector<1x1x4x4xf32>
    %402 = vector.shape_cast %401 : vector<1x1x4x4xf32> to vector<4x4xf32>
    %403 = vector.extract_strided_slice %402 {offsets = [0, 0], sizes = [4, 1], strides = [1, 1]} : vector<4x4xf32> to vector<4x1xf32>
    %404 = vector.extract_strided_slice %273 {offsets = [0, 0], sizes = [1, 256], strides = [1, 1]} : vector<4x256xf32> to vector<1x256xf32>
    %405 = vector.broadcast %403 : vector<4x1xf32> to vector<4x256xf32>
    %406 = vector.broadcast %404 : vector<1x256xf32> to vector<4x256xf32>
    %407 = arith.mulf %405, %406 : vector<4x256xf32>
    %408 = vector.extract_strided_slice %402 {offsets = [0, 1], sizes = [4, 1], strides = [1, 1]} : vector<4x4xf32> to vector<4x1xf32>
    %409 = vector.extract_strided_slice %273 {offsets = [1, 0], sizes = [1, 256], strides = [1, 1]} : vector<4x256xf32> to vector<1x256xf32>
    %410 = vector.broadcast %408 : vector<4x1xf32> to vector<4x256xf32>
    %411 = vector.broadcast %409 : vector<1x256xf32> to vector<4x256xf32>
    %412 = arith.mulf %410, %411 : vector<4x256xf32>
    %413 = arith.addf %407, %412 : vector<4x256xf32>
    %414 = vector.extract_strided_slice %402 {offsets = [0, 2], sizes = [4, 1], strides = [1, 1]} : vector<4x4xf32> to vector<4x1xf32>
    %415 = vector.extract_strided_slice %273 {offsets = [2, 0], sizes = [1, 256], strides = [1, 1]} : vector<4x256xf32> to vector<1x256xf32>
    %416 = vector.broadcast %414 : vector<4x1xf32> to vector<4x256xf32>
    %417 = vector.broadcast %415 : vector<1x256xf32> to vector<4x256xf32>
    %418 = arith.mulf %416, %417 : vector<4x256xf32>
    %419 = arith.addf %413, %418 : vector<4x256xf32>
    %420 = vector.extract_strided_slice %402 {offsets = [0, 3], sizes = [4, 1], strides = [1, 1]} : vector<4x4xf32> to vector<4x1xf32>
    %421 = vector.extract_strided_slice %273 {offsets = [3, 0], sizes = [1, 256], strides = [1, 1]} : vector<4x256xf32> to vector<1x256xf32>
    %422 = vector.broadcast %420 : vector<4x1xf32> to vector<4x256xf32>
    %423 = vector.broadcast %421 : vector<1x256xf32> to vector<4x256xf32>
    %424 = arith.mulf %422, %423 : vector<4x256xf32>
    %425 = arith.addf %419, %424 : vector<4x256xf32>
    %426 = arith.addf %400, %425 : vector<4x256xf32>
    %c1_70 = arith.constant 1 : index
    %c2_71 = arith.constant 2 : index
    %c0_72 = arith.constant 0 : index
    %c0_73 = arith.constant 0 : index
    %427 = vector.load %arg3[%c1_70, %c2_71, %c0_72, %c0_73] : memref<3x3x4x4xf32, #tpu.memory_space<vmem>>, vector<1x1x4x4xf32>
    %428 = vector.shape_cast %427 : vector<1x1x4x4xf32> to vector<4x4xf32>
    %429 = vector.extract_strided_slice %428 {offsets = [0, 0], sizes = [4, 1], strides = [1, 1]} : vector<4x4xf32> to vector<4x1xf32>
    %430 = vector.extract_strided_slice %289 {offsets = [0, 0], sizes = [1, 256], strides = [1, 1]} : vector<4x256xf32> to vector<1x256xf32>
    %431 = vector.broadcast %429 : vector<4x1xf32> to vector<4x256xf32>
    %432 = vector.broadcast %430 : vector<1x256xf32> to vector<4x256xf32>
    %433 = arith.mulf %431, %432 : vector<4x256xf32>
    %434 = vector.extract_strided_slice %428 {offsets = [0, 1], sizes = [4, 1], strides = [1, 1]} : vector<4x4xf32> to vector<4x1xf32>
    %435 = vector.extract_strided_slice %289 {offsets = [1, 0], sizes = [1, 256], strides = [1, 1]} : vector<4x256xf32> to vector<1x256xf32>
    %436 = vector.broadcast %434 : vector<4x1xf32> to vector<4x256xf32>
    %437 = vector.broadcast %435 : vector<1x256xf32> to vector<4x256xf32>
    %438 = arith.mulf %436, %437 : vector<4x256xf32>
    %439 = arith.addf %433, %438 : vector<4x256xf32>
    %440 = vector.extract_strided_slice %428 {offsets = [0, 2], sizes = [4, 1], strides = [1, 1]} : vector<4x4xf32> to vector<4x1xf32>
    %441 = vector.extract_strided_slice %289 {offsets = [2, 0], sizes = [1, 256], strides = [1, 1]} : vector<4x256xf32> to vector<1x256xf32>
    %442 = vector.broadcast %440 : vector<4x1xf32> to vector<4x256xf32>
    %443 = vector.broadcast %441 : vector<1x256xf32> to vector<4x256xf32>
    %444 = arith.mulf %442, %443 : vector<4x256xf32>
    %445 = arith.addf %439, %444 : vector<4x256xf32>
    %446 = vector.extract_strided_slice %428 {offsets = [0, 3], sizes = [4, 1], strides = [1, 1]} : vector<4x4xf32> to vector<4x1xf32>
    %447 = vector.extract_strided_slice %289 {offsets = [3, 0], sizes = [1, 256], strides = [1, 1]} : vector<4x256xf32> to vector<1x256xf32>
    %448 = vector.broadcast %446 : vector<4x1xf32> to vector<4x256xf32>
    %449 = vector.broadcast %447 : vector<1x256xf32> to vector<4x256xf32>
    %450 = arith.mulf %448, %449 : vector<4x256xf32>
    %451 = arith.addf %445, %450 : vector<4x256xf32>
    %452 = arith.addf %426, %451 : vector<4x256xf32>
    %453 = arith.addf %375, %452 : vector<4x256xf32>
    %c2_74 = arith.constant 2 : index
    %c0_75 = arith.constant 0 : index
    %c0_76 = arith.constant 0 : index
    %c0_77 = arith.constant 0 : index
    %454 = vector.load %arg3[%c2_74, %c0_75, %c0_76, %c0_77] : memref<3x3x4x4xf32, #tpu.memory_space<vmem>>, vector<1x1x4x4xf32>
    %455 = vector.shape_cast %454 : vector<1x1x4x4xf32> to vector<4x4xf32>
    %456 = vector.extract_strided_slice %455 {offsets = [0, 0], sizes = [4, 1], strides = [1, 1]} : vector<4x4xf32> to vector<4x1xf32>
    %457 = vector.extract_strided_slice %282 {offsets = [0, 0], sizes = [1, 256], strides = [1, 1]} : vector<4x256xf32> to vector<1x256xf32>
    %458 = vector.broadcast %456 : vector<4x1xf32> to vector<4x256xf32>
    %459 = vector.broadcast %457 : vector<1x256xf32> to vector<4x256xf32>
    %460 = arith.mulf %458, %459 : vector<4x256xf32>
    %461 = vector.extract_strided_slice %455 {offsets = [0, 1], sizes = [4, 1], strides = [1, 1]} : vector<4x4xf32> to vector<4x1xf32>
    %462 = vector.extract_strided_slice %282 {offsets = [1, 0], sizes = [1, 256], strides = [1, 1]} : vector<4x256xf32> to vector<1x256xf32>
    %463 = vector.broadcast %461 : vector<4x1xf32> to vector<4x256xf32>
    %464 = vector.broadcast %462 : vector<1x256xf32> to vector<4x256xf32>
    %465 = arith.mulf %463, %464 : vector<4x256xf32>
    %466 = arith.addf %460, %465 : vector<4x256xf32>
    %467 = vector.extract_strided_slice %455 {offsets = [0, 2], sizes = [4, 1], strides = [1, 1]} : vector<4x4xf32> to vector<4x1xf32>
    %468 = vector.extract_strided_slice %282 {offsets = [2, 0], sizes = [1, 256], strides = [1, 1]} : vector<4x256xf32> to vector<1x256xf32>
    %469 = vector.broadcast %467 : vector<4x1xf32> to vector<4x256xf32>
    %470 = vector.broadcast %468 : vector<1x256xf32> to vector<4x256xf32>
    %471 = arith.mulf %469, %470 : vector<4x256xf32>
    %472 = arith.addf %466, %471 : vector<4x256xf32>
    %473 = vector.extract_strided_slice %455 {offsets = [0, 3], sizes = [4, 1], strides = [1, 1]} : vector<4x4xf32> to vector<4x1xf32>
    %474 = vector.extract_strided_slice %282 {offsets = [3, 0], sizes = [1, 256], strides = [1, 1]} : vector<4x256xf32> to vector<1x256xf32>
    %475 = vector.broadcast %473 : vector<4x1xf32> to vector<4x256xf32>
    %476 = vector.broadcast %474 : vector<1x256xf32> to vector<4x256xf32>
    %477 = arith.mulf %475, %476 : vector<4x256xf32>
    %478 = arith.addf %472, %477 : vector<4x256xf32>
    %c2_78 = arith.constant 2 : index
    %c1_79 = arith.constant 1 : index
    %c0_80 = arith.constant 0 : index
    %c0_81 = arith.constant 0 : index
    %479 = vector.load %arg3[%c2_78, %c1_79, %c0_80, %c0_81] : memref<3x3x4x4xf32, #tpu.memory_space<vmem>>, vector<1x1x4x4xf32>
    %480 = vector.shape_cast %479 : vector<1x1x4x4xf32> to vector<4x4xf32>
    %481 = vector.extract_strided_slice %480 {offsets = [0, 0], sizes = [4, 1], strides = [1, 1]} : vector<4x4xf32> to vector<4x1xf32>
    %482 = vector.extract_strided_slice %273 {offsets = [0, 0], sizes = [1, 256], strides = [1, 1]} : vector<4x256xf32> to vector<1x256xf32>
    %483 = vector.broadcast %481 : vector<4x1xf32> to vector<4x256xf32>
    %484 = vector.broadcast %482 : vector<1x256xf32> to vector<4x256xf32>
    %485 = arith.mulf %483, %484 : vector<4x256xf32>
    %486 = vector.extract_strided_slice %480 {offsets = [0, 1], sizes = [4, 1], strides = [1, 1]} : vector<4x4xf32> to vector<4x1xf32>
    %487 = vector.extract_strided_slice %273 {offsets = [1, 0], sizes = [1, 256], strides = [1, 1]} : vector<4x256xf32> to vector<1x256xf32>
    %488 = vector.broadcast %486 : vector<4x1xf32> to vector<4x256xf32>
    %489 = vector.broadcast %487 : vector<1x256xf32> to vector<4x256xf32>
    %490 = arith.mulf %488, %489 : vector<4x256xf32>
    %491 = arith.addf %485, %490 : vector<4x256xf32>
    %492 = vector.extract_strided_slice %480 {offsets = [0, 2], sizes = [4, 1], strides = [1, 1]} : vector<4x4xf32> to vector<4x1xf32>
    %493 = vector.extract_strided_slice %273 {offsets = [2, 0], sizes = [1, 256], strides = [1, 1]} : vector<4x256xf32> to vector<1x256xf32>
    %494 = vector.broadcast %492 : vector<4x1xf32> to vector<4x256xf32>
    %495 = vector.broadcast %493 : vector<1x256xf32> to vector<4x256xf32>
    %496 = arith.mulf %494, %495 : vector<4x256xf32>
    %497 = arith.addf %491, %496 : vector<4x256xf32>
    %498 = vector.extract_strided_slice %480 {offsets = [0, 3], sizes = [4, 1], strides = [1, 1]} : vector<4x4xf32> to vector<4x1xf32>
    %499 = vector.extract_strided_slice %273 {offsets = [3, 0], sizes = [1, 256], strides = [1, 1]} : vector<4x256xf32> to vector<1x256xf32>
    %500 = vector.broadcast %498 : vector<4x1xf32> to vector<4x256xf32>
    %501 = vector.broadcast %499 : vector<1x256xf32> to vector<4x256xf32>
    %502 = arith.mulf %500, %501 : vector<4x256xf32>
    %503 = arith.addf %497, %502 : vector<4x256xf32>
    %504 = arith.addf %478, %503 : vector<4x256xf32>
    %c2_82 = arith.constant 2 : index
    %c2_83 = arith.constant 2 : index
    %c0_84 = arith.constant 0 : index
    %c0_85 = arith.constant 0 : index
    %505 = vector.load %arg3[%c2_82, %c2_83, %c0_84, %c0_85] : memref<3x3x4x4xf32, #tpu.memory_space<vmem>>, vector<1x1x4x4xf32>
    %506 = vector.shape_cast %505 : vector<1x1x4x4xf32> to vector<4x4xf32>
    %507 = vector.extract_strided_slice %506 {offsets = [0, 0], sizes = [4, 1], strides = [1, 1]} : vector<4x4xf32> to vector<4x1xf32>
    %508 = vector.extract_strided_slice %289 {offsets = [0, 0], sizes = [1, 256], strides = [1, 1]} : vector<4x256xf32> to vector<1x256xf32>
    %509 = vector.broadcast %507 : vector<4x1xf32> to vector<4x256xf32>
    %510 = vector.broadcast %508 : vector<1x256xf32> to vector<4x256xf32>
    %511 = arith.mulf %509, %510 : vector<4x256xf32>
    %512 = vector.extract_strided_slice %506 {offsets = [0, 1], sizes = [4, 1], strides = [1, 1]} : vector<4x4xf32> to vector<4x1xf32>
    %513 = vector.extract_strided_slice %289 {offsets = [1, 0], sizes = [1, 256], strides = [1, 1]} : vector<4x256xf32> to vector<1x256xf32>
    %514 = vector.broadcast %512 : vector<4x1xf32> to vector<4x256xf32>
    %515 = vector.broadcast %513 : vector<1x256xf32> to vector<4x256xf32>
    %516 = arith.mulf %514, %515 : vector<4x256xf32>
    %517 = arith.addf %511, %516 : vector<4x256xf32>
    %518 = vector.extract_strided_slice %506 {offsets = [0, 2], sizes = [4, 1], strides = [1, 1]} : vector<4x4xf32> to vector<4x1xf32>
    %519 = vector.extract_strided_slice %289 {offsets = [2, 0], sizes = [1, 256], strides = [1, 1]} : vector<4x256xf32> to vector<1x256xf32>
    %520 = vector.broadcast %518 : vector<4x1xf32> to vector<4x256xf32>
    %521 = vector.broadcast %519 : vector<1x256xf32> to vector<4x256xf32>
    %522 = arith.mulf %520, %521 : vector<4x256xf32>
    %523 = arith.addf %517, %522 : vector<4x256xf32>
    %524 = vector.extract_strided_slice %506 {offsets = [0, 3], sizes = [4, 1], strides = [1, 1]} : vector<4x4xf32> to vector<4x1xf32>
    %525 = vector.extract_strided_slice %289 {offsets = [3, 0], sizes = [1, 256], strides = [1, 1]} : vector<4x256xf32> to vector<1x256xf32>
    %526 = vector.broadcast %524 : vector<4x1xf32> to vector<4x256xf32>
    %527 = vector.broadcast %525 : vector<1x256xf32> to vector<4x256xf32>
    %528 = arith.mulf %526, %527 : vector<4x256xf32>
    %529 = arith.addf %523, %528 : vector<4x256xf32>
    %530 = arith.addf %504, %529 : vector<4x256xf32>
    %c240_i32_86 = arith.constant 240 : i32
    %531 = tpu.dynamic_rotate %530 by %c240_i32_86 dim 1 : vector<4x256xf32>, i32 -> vector<4x256xf32>
    %c16_i32_87 = arith.constant 16 : i32
    %532 = tpu.dynamic_rotate %530 by %c16_i32_87 dim 1 : vector<4x256xf32>, i32 -> vector<4x256xf32>
    %533 = vector.broadcast %4 : vector<1x256xf32> to vector<4x256xf32>
    %534 = arith.mulf %533, %532 : vector<4x256xf32>
    %cst_88 = arith.constant 1.000000e+00 : f32
    %535 = vector.broadcast %cst_88 : f32 to vector<1x256xf32>
    %536 = arith.subf %535, %4 : vector<1x256xf32>
    %537 = vector.broadcast %536 : vector<1x256xf32> to vector<4x256xf32>
    %538 = arith.mulf %537, %531 : vector<4x256xf32>
    %539 = arith.addf %534, %538 : vector<4x256xf32>
    %540 = arith.addf %453, %539 : vector<4x256xf32>
    %c0_89 = arith.constant 0 : index
    %c0_90 = arith.constant 0 : index
    %c0_91 = arith.constant 0 : index
    %541 = vector.load %arg1[%c0_89, %c0_90, %c0_91] : memref<1x4x256xf32, #tpu.memory_space<vmem>>, vector<1x4x256xf32>
    %542 = vector.shape_cast %541 : vector<1x4x256xf32> to vector<4x256xf32>
    %543 = arith.addf %542, %540 : vector<4x256xf32>
    %c0_92 = arith.constant 0 : index
    %c0_93 = arith.constant 0 : index
    %c0_94 = arith.constant 0 : index
    %544 = vector.load %arg5[%c0_92, %c0_93, %c0_94] : memref<1x4x256xf32, #tpu.memory_space<vmem>>, vector<1x4x256xf32>
    %545 = vector.shape_cast %544 : vector<1x4x256xf32> to vector<4x256xf32>
    %546 = vector.shape_cast %543 : vector<4x256xf32> to vector<1x4x256xf32>
    tpu.vector_store %arg5[%c0_92, %c0_93, %c0_94], %546 {strides = array<i32>} : memref<1x4x256xf32, #tpu.memory_space<vmem>>, vector<1x4x256xf32>,
    return
  }
  func.func @transform_0(%arg0: i32) -> (i32, i32, i32) {
    %c0_i32 = arith.constant 0 : i32
    %c0_i32_0 = arith.constant 0 : i32
    %c0_i32_1 = arith.constant 0 : i32
    return %arg0, %c0_i32, %c0_i32_0 : i32, i32, i32
  }
  func.func @transform_1(%arg0: i32) -> (i32, i32, i32, i32) {
    %c0_i32 = arith.constant 0 : i32
    %c0_i32_0 = arith.constant 0 : i32
    %c0_i32_1 = arith.constant 0 : i32
    %c0_i32_2 = arith.constant 0 : i32
    %c0_i32_3 = arith.constant 0 : i32
    return %c0_i32, %c0_i32_0, %c0_i32_1, %c0_i32_2 : i32, i32, i32, i32
  }
  func.func @transform_2(%arg0: i32) -> (i32, i32, i32, i32) {
    %c0_i32 = arith.constant 0 : i32
    %c0_i32_0 = arith.constant 0 : i32
    %c0_i32_1 = arith.constant 0 : i32
    %c0_i32_2 = arith.constant 0 : i32
    %c0_i32_3 = arith.constant 0 : i32
    return %c0_i32, %c0_i32_0, %c0_i32_1, %c0_i32_2 : i32, i32, i32, i32
  }
  func.func @transform_3(%arg0: i32) -> (i32, i32) {
    %c0_i32 = arith.constant 0 : i32
    %c0_i32_0 = arith.constant 0 : i32
    %c0_i32_1 = arith.constant 0 : i32
    return %c0_i32, %c0_i32_0 : i32, i32
  }
  func.func @transform_4(%arg0: i32) -> (i32, i32, i32) {
    %c0_i32 = arith.constant 0 : i32
    %c0_i32_0 = arith.constant 0 : i32
    %c0_i32_1 = arith.constant 0 : i32
    return %arg0, %c0_i32, %c0_i32_0 : i32, i32, i32
  }
}

</mosaic_0001>

<llo_original>
// kernel: residual_block_forward.1
$region0: #{residual_block_forward.1}
  #allocation0 [shape = 'u32[]', space=smem, size = 0x4, offset = 0x4, fixed_abs, tag = 'smem constant byte address 0x4 - core index']
  #allocation1 [shape = 'u32[72,128]{1,0:T(1,128)}', space=vmem, size = 0x9000, scoped, tag = 'internal scratch']
  %s0 = inlined_call_operand.vmem [shape: f32[2,4,256], index: 0, kind: input, shape index: {}]
  %s1 = inlined_call_operand.vmem [shape: f32[3,3,4,4], index: 1, kind: input, shape index: {}]
  %s2 = inlined_call_operand.vmem [shape: f32[3,3,4,4], index: 2, kind: input, shape index: {}]
  %s3 = inlined_call_operand.vmem [shape: f32[4,256], index: 3, kind: input, shape index: {}]
  %s4 = inlined_call_operand.vmem [shape: f32[2,4,256], index: 4, kind: output, shape index: {}]
  %s5 = sld [smem:[#allocation0]]
  $region49: #{residual_block_forward.1} parent=0
    _
  %s7 = ssub.s32 1, %s5
  %s8 = scalar_select 0, %s7, %s5
  loop: start=0, step=1, limit=4
  $region2: #{residual_block_forward.1} parent=0 // loop_pre_header
    _
  $region3: #{residual_block_forward.1} parent=0 // loop_header
    %s10 = sphi 0, %s14
    %p11 = scmp.ge.s32.totalorder %s10, 4
    %s20 = sphi 0, %s22
    %s23 = sphi 0, %s20
    %s24 = sphi 0, %s23
    %s40 = sphi 0, %s24
    %s44 = sphi 0, %s44
    %s46 = sphi 0, %s44
    %s47 = sphi 0, %s46
    %s61 = sphi 0, %s47
    %s65 = sphi 0, %s65
    %s67 = sphi 0, %s65
    %s68 = sphi 0, %s67
    %s82 = sphi 0, %s68
    %s86 = sphi 0, %s86
    %s88 = sphi 0, %s86
    %s89 = sphi 0, %s88
    %s103 = sphi 0, %s89
    %s109 = sphi 0, %s111
    %s112 = sphi 0, %s109
    %s113 = sphi 0, %s112
    %s129 = sphi 0, %s113
  $region4: #{residual_block_forward.1} parent=0 // loop_header_branch
    %13 = sbr.rel (%p11) target = $region8
  $region5: #{residual_block_forward.1} parent=0 // loop_body
    %s15 = ssub.s32 %s10, 1
    %s16 = ssub.s32 %s10, 2
    %s17 = sadd.s32 %s10, 1
    %s18 = ssub.s32 %s10, %s17
    %p19 = scmp.eq.s32.totalorder %s18, 0
    %s21 = sadd.s32 %s20, 1
    %s22 = scalar_select %p19, %s20, %s21
    %p25 = pneg %p19
    %p26 = scmp.eq.s32.totalorder %s10, 1
    %p27 = por %p25, %p26
    %p28 = scmp.ne.s32.totalorder %s20, %s23
    %p29 = scmp.eq.s32.totalorder %s10, 0
    %p30 = por %p28, %p29
    %p31 = scmp.ne.s32.totalorder %s20, %s23
    %p32 = scmp.eq.s32.totalorder %s15, 1
    %p33 = por %p31, %p32
    %p34 = scmp.ne.s32.totalorder %s23, %s24
    %p35 = scmp.eq.s32.totalorder %s15, 0
    %p36 = por %p34, %p35
    %p37 = scmp.ne.s32.totalorder %s23, %s24
    %p38 = scmp.eq.s32.totalorder %s16, 1
    %p39 = por %p37, %p38
    %p41 = scmp.ne.s32.totalorder %s24, %s40
    %p42 = scmp.eq.s32.totalorder %s16, 0
    %p43 = por %p41, %p42
    %s45 = sadd.s32 %s44, 1
    %p48 = scmp.eq.s32.totalorder %s10, 1
    %p49 = scmp.ne.s32.totalorder %s44, %s46
    %p50 = scmp.eq.s32.totalorder %s10, 0
    %p51 = por %p49, %p50
    %p52 = scmp.ne.s32.totalorder %s44, %s46
    %p53 = scmp.eq.s32.totalorder %s15, 1
    %p54 = por %p52, %p53
    %p55 = scmp.ne.s32.totalorder %s46, %s47
    %p56 = scmp.eq.s32.totalorder %s15, 0
    %p57 = por %p55, %p56
    %p58 = scmp.ne.s32.totalorder %s46, %s47
    %p59 = scmp.eq.s32.totalorder %s16, 1
    %p60 = por %p58, %p59
    %p62 = scmp.ne.s32.totalorder %s47, %s61
    %p63 = scmp.eq.s32.totalorder %s16, 0
    %p64 = por %p62, %p63
    %s66 = sadd.s32 %s65, 1
    %p69 = scmp.eq.s32.totalorder %s10, 1
    %p70 = scmp.ne.s32.totalorder %s65, %s67
    %p71 = scmp.eq.s32.totalorder %s10, 0
    %p72 = por %p70, %p71
    %p73 = scmp.ne.s32.totalorder %s65, %s67
    %p74 = scmp.eq.s32.totalorder %s15, 1
    %p75 = por %p73, %p74
    %p76 = scmp.ne.s32.totalorder %s67, %s68
    %p77 = scmp.eq.s32.totalorder %s15, 0
    %p78 = por %p76, %p77
    %p79 = scmp.ne.s32.totalorder %s67, %s68
    %p80 = scmp.eq.s32.totalorder %s16, 1
    %p81 = por %p79, %p80
    %p83 = scmp.ne.s32.totalorder %s68, %s82
    %p84 = scmp.eq.s32.totalorder %s16, 0
    %p85 = por %p83, %p84
    %s87 = sadd.s32 %s86, 1
    %p90 = scmp.eq.s32.totalorder %s10, 1
    %p91 = scmp.ne.s32.totalorder %s86, %s88
    %p92 = scmp.eq.s32.totalorder %s10, 0
    %p93 = por %p91, %p92
    %p94 = scmp.ne.s32.totalorder %s86, %s88
    %p95 = scmp.eq.s32.totalorder %s15, 1
    %p96 = por %p94, %p95
    %p97 = scmp.ne.s32.totalorder %s88, %s89
    %p98 = scmp.eq.s32.totalorder %s15, 0
    %p99 = por %p97, %p98
    %p100 = scmp.ne.s32.totalorder %s88, %s89
    %p101 = scmp.eq.s32.totalorder %s16, 1
    %p102 = por %p100, %p101
    %p104 = scmp.ne.s32.totalorder %s89, %s103
    %p105 = scmp.eq.s32.totalorder %s16, 0
    %p106 = por %p104, %p105
    %s107 = ssub.s32 %s10, %s17
    %p108 = scmp.eq.s32.totalorder %s107, 0
    %s110 = sadd.s32 %s109, 1
    %s111 = scalar_select %p108, %s109, %s110
    %p114 = pneg %p108
    %p115 = scmp.eq.s32.totalorder %s10, 1
    %p116 = por %p114, %p115
    %p117 = scmp.ne.s32.totalorder %s109, %s112
    %p118 = scmp.eq.s32.totalorder %s10, 0
    %p119 = por %p117, %p118
    %p120 = scmp.ne.s32.totalorder %s109, %s112
    %p121 = scmp.eq.s32.totalorder %s15, 1
    %p122 = por %p120, %p121
    %p123 = scmp.ne.s32.totalorder %s112, %s113
    %p124 = scmp.eq.s32.totalorder %s15, 0
    %p125 = por %p123, %p124
    %p126 = scmp.ne.s32.totalorder %s112, %s113
    %p127 = scmp.eq.s32.totalorder %s16, 1
    %p128 = por %p126, %p127
    %p130 = scmp.ne.s32.totalorder %s113, %s129
    %p131 = scmp.eq.s32.totalorder %s16, 0
    %p132 = por %p130, %p131
    %p133 = scmp.le.s32.totalorder 1, %s10
    %p134 = scmp.lt.s32.totalorder %s10, 3
    %p135 = pnand %p133, %p134
    %p136 = pneg %p135
    // Predicated region
    $region9: #{residual_block_forward.1} parent=5 // pred_check
      _
    $region10: #{residual_block_forward.1} parent=5 // pred_check_branch
      %138 = sbr.rel (%p135) target = $region12
    $region11: #{residual_block_forward.1} parent=5 // pred_region
      %s139 = ssub.s32 %s10, 1
      // Predicated region
      $region13: #{residual_block_forward.1} parent=11 // pred_check
        %p140 = pneg %p57
      $region14: #{residual_block_forward.1} parent=11 // pred_check_branch
        %142 = sbr.rel (%p140) target = $region16
      $region15: #{residual_block_forward.1} parent=11 // pred_region
        _
      $region16: #{residual_block_forward.1} parent=11 // pred_fallthru
        _
      // Predicated region
      $region17: #{residual_block_forward.1} parent=11 // pred_check
        %p143 = pneg %p78
      $region18: #{residual_block_forward.1} parent=11 // pred_check_branch
        %145 = sbr.rel (%p143) target = $region20
      $region19: #{residual_block_forward.1} parent=11 // pred_region
        _
      $region20: #{residual_block_forward.1} parent=11 // pred_fallthru
        _
      // Predicated region
      $region21: #{residual_block_forward.1} parent=11 // pred_check
        %p146 = pneg %p99
      $region22: #{residual_block_forward.1} parent=11 // pred_check_branch
        %148 = sbr.rel (%p146) target = $region24
      $region23: #{residual_block_forward.1} parent=11 // pred_region
        _
      $region24: #{residual_block_forward.1} parent=11 // pred_fallthru
        _
    $region12: #{residual_block_forward.1} parent=5 // pred_fallthru
      _
    %p149 = scmp.lt.s32.totalorder %s10, 2
    // Predicated region
    $region25: #{residual_block_forward.1} parent=5 // pred_check
      %p150 = pneg %p149
    $region26: #{residual_block_forward.1} parent=5 // pred_check_branch
      %152 = sbr.rel (%p150) target = $region28
    $region27: #{residual_block_forward.1} parent=5 // pred_region
      // Predicated region
      $region29: #{residual_block_forward.1} parent=27 // pred_check
        %p153 = pneg %p30
      $region30: #{residual_block_forward.1} parent=27 // pred_check_branch
        %155 = sbr.rel (%p153) target = $region32
      $region31: #{residual_block_forward.1} parent=27 // pred_region
        %p156 = scmp.lt.s32.totalorder %s10, 1
        %s157 = scalar_select %p156, %s10, 1
        %s158 = smul.addr %s157, 2
        %s159 = smul.addr %s158, 4
        %s160 = scalar_lea.vmem %s0, %s159
      $region32: #{residual_block_forward.1} parent=27 // pred_fallthru
        _
    $region28: #{residual_block_forward.1} parent=5 // pred_fallthru
      _
    %p161 = scmp.le.s32.totalorder 1, %s10
    %p162 = scmp.lt.s32.totalorder %s10, 3
    %p163 = pnand %p161, %p162
    %p164 = pneg %p163
    // Predicated region
    $region33: #{residual_block_forward.1} parent=5 // pred_check
      _
    $region34: #{residual_block_forward.1} parent=5 // pred_check_branch
      %166 = sbr.rel (%p163) target = $region36
    $region35: #{residual_block_forward.1} parent=5 // pred_region
      %s167 = ssub.s32 %s10, 1
      %p168 = scmp.lt.s32.totalorder %s15, 1
      %s169 = scalar_select %p168, %s15, 1
      %s170 = smul.addr %s169, 2
      %s171 = smul.addr %s170, 4
      %s172 = scalar_lea.vmem %s0, %s171
      %p173 = pneg %p36
      %p174 = pneg %p33
      %p175 = pneg %p57
      %p176 = pneg %p54
      %p177 = pneg %p78
      %p178 = pneg %p75
      %p179 = pneg %p99
      %p180 = pneg %p96
      %p181 = pneg %p125
      %p182 = pneg %p122
      %p183 = scmp.lt.s32.totalorder %s15, 1
      %s184 = scalar_select %p183, %s15, 1
      %s185 = smul.addr %s184, 2
      %s186 = smul.addr %s185, 4
      %s187 = scalar_lea.vmem %s4, %s186
      %p188 = scmp.lt.s32.totalorder %s15, 1
      %s189 = scalar_select %p188, %s15, 1
      %s190 = smul.addr %s189, 2
      %s191 = smul.addr %s190, 4
      %s192 = scalar_lea.vmem %s0, %s191
      %p193 = scmp.lt.s32.totalorder %s15, 1
      %s194 = scalar_select %p193, %s15, 1
      %s195 = smul.addr %s194, 2
      %s196 = smul.addr %s195, 4
      %s197 = scalar_lea.vmem %s4, %s196
      %v198 = vld [vmem:[%s3] sm:$0xff]
      %v199 = vld [vmem:[%s192] sm:$0xff]
      %201 = vst [vmem:[#allocation1] ss:$2 sm:$0xff] %v199
      %v202 = vld.sshfl [vmem:[#allocation1] sm:$0xff pattern:$0x75316420]
      %v203 = vld.sshfl [vmem:[#allocation1 + $0x8] sm:$0xff pattern:$0x75316420]
      %206 = vrot.lane.b32.xlu0 %v202, 127
      %v207 = vpop.permute.xlu0 %206
      %208 = vrot.lane.b32.xlu0 %v203, 127
      %v209 = vpop.permute.xlu0 %208
      %v210 = vlaneseq
      %v211 = vand.u32 %v210, 127
      %vm212 = vcmp.lt.s32.totalorder %v211, 127
      %v213 = vsel %vm212, %v207, %v209
      %v214 = vsel %vm212, %v209, %v207
      %215 = vst [vmem:[#allocation1] ss:$2 sm:$0xff] %v199
      %v216 = vld.sshfl [vmem:[#allocation1] sm:$0xff pattern:$0x75316420]
      %v217 = vld.sshfl [vmem:[#allocation1 + $0x8] sm:$0xff pattern:$0x75316420]
      %220 = vrot.lane.b32.xlu0 %v216, 1
      %v221 = vpop.permute.xlu0 %220
      %222 = vrot.lane.b32.xlu0 %v217, 1
      %v223 = vpop.permute.xlu0 %222
      %vm224 = vcmp.lt.s32.totalorder %v211, 1
      %v225 = vsel %vm224, %v221, %v223
      %v226 = vsel %vm224, %v223, %v221
      %v228 = vperm.slane %v198, 0
      %v229 = vperm.slane %v198, 4
      %v232 = vperm.slane %v228, 0
      %v233 = vperm.slane %v229, 0
      %v234 = vmul.f32 %v232, %v213
      %v235 = vmul.f32 %v233, %v214
      %v236 = vsub.f32 1.0, %v198
      %v238 = vperm.slane %v236, 0
      %v239 = vperm.slane %v236, 4
      %v242 = vperm.slane %v238, 0
      %v243 = vperm.slane %v239, 0
      %v244 = vmul.f32 %v242, %v226
      %v245 = vmul.f32 %v243, %v225
      %v246 = vadd.f32 %v234, %v244
      %v247 = vadd.f32 %v235, %v245
      %v248 = vperm.slane %v198, 1
      %v249 = vperm.slane %v198, 5
      %v252 = vperm.slane %v248, 1
      %v253 = vperm.slane %v249, 1
      %v254 = vmul.f32 %v252, %v226
      %v255 = vmul.f32 %v253, %v225
      %v256 = vperm.slane %v236, 1
      %v257 = vperm.slane %v236, 5
      %v260 = vperm.slane %v256, 1
      %v261 = vperm.slane %v257, 1
      %v262 = vmul.f32 %v260, %v213
      %v263 = vmul.f32 %v261, %v214
      %v264 = vadd.f32 %v254, %v262
      %v265 = vadd.f32 %v255, %v263
      %v266 = vld [vmem:[%s1] sm:$0xf]
      %268 = vset.pattern.permute.xlu0 0
      %269 = vperm.xlu0 %268, %v266
      %v270 = vpop.permute.xlu0 %269
      %v272 = vperm.slane %v246, 0
      %v273 = vperm.slane %v247, 0
      %v274 = vmul.f32 %v270, %v272
      %v275 = vmul.f32 %v270, %v273
      %276 = vset.pattern.permute.xlu0 1
      %277 = vperm.xlu0 %276, %v266
      %v278 = vpop.permute.xlu0 %277
      %v280 = vperm.slane %v246, 1
      %v281 = vperm.slane %v247, 1
      %v282 = vmul.f32 %v278, %v280
      %v283 = vmul.f32 %v278, %v281
      %v284 = vadd.f32 %v274, %v282
      %v285 = vadd.f32 %v275, %v283
      %286 = vset.pattern.permute.xlu0 2
      %287 = vperm.xlu0 %286, %v266
      %v288 = vpop.permute.xlu0 %287
      %v290 = vperm.slane %v246, 2
      %v291 = vperm.slane %v247, 2
      %v292 = vmul.f32 %v288, %v290
      %v293 = vmul.f32 %v288, %v291
      %v294 = vadd.f32 %v284, %v292
      %v295 = vadd.f32 %v285, %v293
      %296 = vset.pattern.permute.xlu0 3
      %297 = vperm.xlu0 %296, %v266
      %v298 = vpop.permute.xlu0 %297
      %v300 = vperm.slane %v246, 3
      %v301 = vperm.slane %v247, 3
      %v302 = vmul.f32 %v298, %v300
      %v303 = vmul.f32 %v298, %v301
      %v304 = vadd.f32 %v294, %v302
      %v305 = vadd.f32 %v295, %v303
      %s306 = scalar_lea.vmem %s1, 4
      %v307 = vld [vmem:[%s306] sm:$0xf]
      %309 = vset.pattern.permute.xlu0 0
      %310 = vperm.xlu0 %309, %v307
      %v311 = vpop.permute.xlu0 %310
      %v313 = vperm.slane %v199, 0
      %v314 = vperm.slane %v199, 4
      %v317 = vperm.slane %v313, 0
      %v318 = vperm.slane %v314, 0
      %v319 = vmul.f32 %v311, %v317
      %v320 = vmul.f32 %v311, %v318
      %321 = vset.pattern.permute.xlu0 1
      %322 = vperm.xlu0 %321, %v307
      %v323 = vpop.permute.xlu0 %322
      %v325 = vperm.slane %v199, 1
      %v326 = vperm.slane %v199, 5
      %v329 = vperm.slane %v325, 1
      %v330 = vperm.slane %v326, 1
      %v331 = vmul.f32 %v323, %v329
      %v332 = vmul.f32 %v323, %v330
      %v333 = vadd.f32 %v319, %v331
      %v334 = vadd.f32 %v320, %v332
      %335 = vset.pattern.permute.xlu0 2
      %336 = vperm.xlu0 %335, %v307
      %v337 = vpop.permute.xlu0 %336
      %v339 = vperm.slane %v199, 2
      %v340 = vperm.slane %v199, 6
      %v343 = vperm.slane %v339, 2
      %v344 = vperm.slane %v340, 2
      %v345 = vmul.f32 %v337, %v343
      %v346 = vmul.f32 %v337, %v344
      %v347 = vadd.f32 %v333, %v345
      %v348 = vadd.f32 %v334, %v346
      %349 = vset.pattern.permute.xlu0 3
      %350 = vperm.xlu0 %349, %v307
      %v351 = vpop.permute.xlu0 %350
      %v353 = vperm.slane %v199, 3
      %v354 = vperm.slane %v199, 7
      %v357 = vperm.slane %v353, 3
      %v358 = vperm.slane %v354, 3
      %v359 = vmul.f32 %v351, %v357
      %v360 = vmul.f32 %v351, %v358
      %v361 = vadd.f32 %v347, %v359
      %v362 = vadd.f32 %v348, %v360
      %v363 = vadd.f32 %v304, %v361
      %v364 = vadd.f32 %v305, %v362
      %s365 = scalar_lea.vmem %s1, 8
      %v366 = vld [vmem:[%s365] sm:$0xf]
      %368 = vset.pattern.permute.xlu0 0
      %369 = vperm.xlu0 %368, %v366
      %v370 = vpop.permute.xlu0 %369
      %v372 = vperm.slane %v264, 0
      %v373 = vperm.slane %v265, 0
      %v374 = vmul.f32 %v370, %v372
      %v375 = vmul.f32 %v370, %v373
      %376 = vset.pattern.permute.xlu0 1
      %377 = vperm.xlu0 %376, %v366
      %v378 = vpop.permute.xlu0 %377
      %v380 = vperm.slane %v264, 1
      %v381 = vperm.slane %v265, 1
      %v382 = vmul.f32 %v378, %v380
      %v383 = vmul.f32 %v378, %v381
      %v384 = vadd.f32 %v374, %v382
      %v385 = vadd.f32 %v375, %v383
      %386 = vset.pattern.permute.xlu0 2
      %387 = vperm.xlu0 %386, %v366
      %v388 = vpop.permute.xlu0 %387
      %v390 = vperm.slane %v264, 2
      %v391 = vperm.slane %v265, 2
      %v392 = vmul.f32 %v388, %v390
      %v393 = vmul.f32 %v388, %v391
      %v394 = vadd.f32 %v384, %v392
      %v395 = vadd.f32 %v385, %v393
      %396 = vset.pattern.permute.xlu0 3
      %397 = vperm.xlu0 %396, %v366
      %v398 = vpop.permute.xlu0 %397
      %v400 = vperm.slane %v264, 3
      %v401 = vperm.slane %v265, 3
      %v402 = vmul.f32 %v398, %v400
      %v403 = vmul.f32 %v398, %v401
      %v404 = vadd.f32 %v394, %v402
      %v405 = vadd.f32 %v395, %v403
      %v406 = vadd.f32 %v363, %v404
      %v407 = vadd.f32 %v364, %v405
      %408 = vrot.lane.b32.xlu0 %v406, 112
      %v409 = vpop.permute.xlu0 %408
      %410 = vrot.lane.b32.xlu0 %v407, 112
      %v411 = vpop.permute.xlu0 %410
      %vm412 = vcmp.lt.s32.totalorder %v211, 112
      %v413 = vsel %vm412, %v409, %v411
      %v414 = vsel %vm412, %v411, %v409
      %415 = vrot.lane.b32.xlu0 %v406, 16
      %v416 = vpop.permute.xlu0 %415
      %417 = vrot.lane.b32.xlu0 %v407, 16
      %v418 = vpop.permute.xlu0 %417
      %vm419 = vcmp.lt.s32.totalorder %v211, 16
      %v420 = vsel %vm419, %v416, %v418
      %v421 = vsel %vm419, %v418, %v416
      %v422 = vperm.slane %v198, 2
      %v423 = vperm.slane %v198, 6
      %v426 = vperm.slane %v422, 2
      %v427 = vperm.slane %v423, 2
      %v428 = vmul.f32 %v426, %v413
      %v429 = vmul.f32 %v427, %v414
      %v430 = vperm.slane %v236, 2
      %v431 = vperm.slane %v236, 6
      %v434 = vperm.slane %v430, 2
      %v435 = vperm.slane %v431, 2
      %v436 = vmul.f32 %v434, %v421
      %v437 = vmul.f32 %v435, %v420
      %v438 = vadd.f32 %v428, %v436
      %v439 = vadd.f32 %v429, %v437
      %s440 = scalar_lea.vmem %s1, 12
      %v441 = vld [vmem:[%s440] sm:$0xf]
      %443 = vset.pattern.permute.xlu0 0
      %444 = vperm.xlu0 %443, %v441
      %v445 = vpop.permute.xlu0 %444
      %v447 = vmul.f32 %v445, %v272
      %v448 = vmul.f32 %v445, %v273
      %449 = vset.pattern.permute.xlu0 1
      %450 = vperm.xlu0 %449, %v441
      %v451 = vpop.permute.xlu0 %450
      %v453 = vmul.f32 %v451, %v280
      %v454 = vmul.f32 %v451, %v281
      %v455 = vadd.f32 %v447, %v453
      %v456 = vadd.f32 %v448, %v454
      %457 = vset.pattern.permute.xlu0 2
      %458 = vperm.xlu0 %457, %v441
      %v459 = vpop.permute.xlu0 %458
      %v461 = vmul.f32 %v459, %v290
      %v462 = vmul.f32 %v459, %v291
      %v463 = vadd.f32 %v455, %v461
      %v464 = vadd.f32 %v456, %v462
      %465 = vset.pattern.permute.xlu0 3
      %466 = vperm.xlu0 %465, %v441
      %v467 = vpop.permute.xlu0 %466
      %v469 = vmul.f32 %v467, %v300
      %v470 = vmul.f32 %v467, %v301
      %v471 = vadd.f32 %v463, %v469
      %v472 = vadd.f32 %v464, %v470
      %s473 = scalar_lea.vmem %s1, 16
      %v474 = vld [vmem:[%s473] sm:$0xf]
      %476 = vset.pattern.permute.xlu0 0
      %477 = vperm.xlu0 %476, %v474
      %v478 = vpop.permute.xlu0 %477
      %v480 = vmul.f32 %v478, %v317
      %v481 = vmul.f32 %v478, %v318
      %482 = vset.pattern.permute.xlu0 1
      %483 = vperm.xlu0 %482, %v474
      %v484 = vpop.permute.xlu0 %483
      %v486 = vmul.f32 %v484, %v329
      %v487 = vmul.f32 %v484, %v330
      %v488 = vadd.f32 %v480, %v486
      %v489 = vadd.f32 %v481, %v487
      %490 = vset.pattern.permute.xlu0 2
      %491 = vperm.xlu0 %490, %v474
      %v492 = vpop.permute.xlu0 %491
      %v494 = vmul.f32 %v492, %v343
      %v495 = vmul.f32 %v492, %v344
      %v496 = vadd.f32 %v488, %v494
      %v497 = vadd.f32 %v489, %v495
      %498 = vset.pattern.permute.xlu0 3
      %499 = vperm.xlu0 %498, %v474
      %v500 = vpop.permute.xlu0 %499
      %v502 = vmul.f32 %v500, %v357
      %v503 = vmul.f32 %v500, %v358
      %v504 = vadd.f32 %v496, %v502
      %v505 = vadd.f32 %v497, %v503
      %v506 = vadd.f32 %v471, %v504
      %v507 = vadd.f32 %v472, %v505
      %s508 = scalar_lea.vmem %s1, 20
      %v509 = vld [vmem:[%s508] sm:$0xf]
      %511 = vset.pattern.permute.xlu0 0
      %512 = vperm.xlu0 %511, %v509
      %v513 = vpop.permute.xlu0 %512
      %v515 = vmul.f32 %v513, %v372
      %v516 = vmul.f32 %v513, %v373
      %517 = vset.pattern.permute.xlu0 1
      %518 = vperm.xlu0 %517, %v509
      %v519 = vpop.permute.xlu0 %518
      %v521 = vmul.f32 %v519, %v380
      %v522 = vmul.f32 %v519, %v381
      %v523 = vadd.f32 %v515, %v521
      %v524 = vadd.f32 %v516, %v522
      %525 = vset.pattern.permute.xlu0 2
      %526 = vperm.xlu0 %525, %v509
      %v527 = vpop.permute.xlu0 %526
      %v529 = vmul.f32 %v527, %v390
      %v530 = vmul.f32 %v527, %v391
      %v531 = vadd.f32 %v523, %v529
      %v532 = vadd.f32 %v524, %v530
      %533 = vset.pattern.permute.xlu0 3
      %534 = vperm.xlu0 %533, %v509
      %v535 = vpop.permute.xlu0 %534
      %v537 = vmul.f32 %v535, %v400
      %v538 = vmul.f32 %v535, %v401
      %v539 = vadd.f32 %v531, %v537
      %v540 = vadd.f32 %v532, %v538
      %v541 = vadd.f32 %v506, %v539
      %v542 = vadd.f32 %v507, %v540
      %v543 = vadd.f32 %v438, %v541
      %v544 = vadd.f32 %v439, %v542
      %s545 = scalar_lea.vmem %s1, 24
      %v546 = vld [vmem:[%s545] sm:$0xf]
      %548 = vset.pattern.permute.xlu0 0
      %549 = vperm.xlu0 %548, %v546
      %v550 = vpop.permute.xlu0 %549
      %v552 = vmul.f32 %v550, %v272
      %v553 = vmul.f32 %v550, %v273
      %554 = vset.pattern.permute.xlu0 1
      %555 = vperm.xlu0 %554, %v546
      %v556 = vpop.permute.xlu0 %555
      %v558 = vmul.f32 %v556, %v280
      %v559 = vmul.f32 %v556, %v281
      %v560 = vadd.f32 %v552, %v558
      %v561 = vadd.f32 %v553, %v559
      %562 = vset.pattern.permute.xlu0 2
      %563 = vperm.xlu0 %562, %v546
      %v564 = vpop.permute.xlu0 %563
      %v566 = vmul.f32 %v564, %v290
      %v567 = vmul.f32 %v564, %v291
      %v568 = vadd.f32 %v560, %v566
      %v569 = vadd.f32 %v561, %v567
      %570 = vset.pattern.permute.xlu0 3
      %571 = vperm.xlu0 %570, %v546
      %v572 = vpop.permute.xlu0 %571
      %v574 = vmul.f32 %v572, %v300
      %v575 = vmul.f32 %v572, %v301
      %v576 = vadd.f32 %v568, %v574
      %v577 = vadd.f32 %v569, %v575
      %s578 = scalar_lea.vmem %s1, 28
      %v579 = vld [vmem:[%s578] sm:$0xf]
      %581 = vset.pattern.permute.xlu0 0
      %582 = vperm.xlu0 %581, %v579
      %v583 = vpop.permute.xlu0 %582
      %v585 = vmul.f32 %v583, %v317
      %v586 = vmul.f32 %v583, %v318
      %587 = vset.pattern.permute.xlu0 1
      %588 = vperm.xlu0 %587, %v579
      %v589 = vpop.permute.xlu0 %588
      %v591 = vmul.f32 %v589, %v329
      %v592 = vmul.f32 %v589, %v330
      %v593 = vadd.f32 %v585, %v591
      %v594 = vadd.f32 %v586, %v592
      %595 = vset.pattern.permute.xlu0 2
      %596 = vperm.xlu0 %595, %v579
      %v597 = vpop.permute.xlu0 %596
      %v599 = vmul.f32 %v597, %v343
      %v600 = vmul.f32 %v597, %v344
      %v601 = vadd.f32 %v593, %v599
      %v602 = vadd.f32 %v594, %v600
      %603 = vset.pattern.permute.xlu0 3
      %604 = vperm.xlu0 %603, %v579
      %v605 = vpop.permute.xlu0 %604
      %v607 = vmul.f32 %v605, %v357
      %v608 = vmul.f32 %v605, %v358
      %v609 = vadd.f32 %v601, %v607
      %v610 = vadd.f32 %v602, %v608
      %v611 = vadd.f32 %v576, %v609
      %v612 = vadd.f32 %v577, %v610
      %s613 = scalar_lea.vmem %s1, 32
      %v614 = vld [vmem:[%s613] sm:$0xf]
      %616 = vset.pattern.permute.xlu0 0
      %617 = vperm.xlu0 %616, %v614
      %v618 = vpop.permute.xlu0 %617
      %v620 = vmul.f32 %v618, %v372
      %v621 = vmul.f32 %v618, %v373
      %622 = vset.pattern.permute.xlu0 1
      %623 = vperm.xlu0 %622, %v614
      %v624 = vpop.permute.xlu0 %623
      %v626 = vmul.f32 %v624, %v380
      %v627 = vmul.f32 %v624, %v381
      %v628 = vadd.f32 %v620, %v626
      %v629 = vadd.f32 %v621, %v627
      %630 = vset.pattern.permute.xlu0 2
      %631 = vperm.xlu0 %630, %v614
      %v632 = vpop.permute.xlu0 %631
      %v634 = vmul.f32 %v632, %v390
      %v635 = vmul.f32 %v632, %v391
      %v636 = vadd.f32 %v628, %v634
      %v637 = vadd.f32 %v629, %v635
      %638 = vset.pattern.permute.xlu0 3
      %639 = vperm.xlu0 %638, %v614
      %v640 = vpop.permute.xlu0 %639
      %v642 = vmul.f32 %v640, %v400
      %v643 = vmul.f32 %v640, %v401
      %v644 = vadd.f32 %v636, %v642
      %v645 = vadd.f32 %v637, %v643
      %v646 = vadd.f32 %v611, %v644
      %v647 = vadd.f32 %v612, %v645
      %648 = vrot.lane.b32.xlu0 %v646, 112
      %v649 = vpop.permute.xlu0 %648
      %650 = vrot.lane.b32.xlu0 %v647, 112
      %v651 = vpop.permute.xlu0 %650
      %v652 = vsel %vm412, %v649, %v651
      %v653 = vsel %vm412, %v651, %v649
      %654 = vrot.lane.b32.xlu0 %v646, 16
      %v655 = vpop.permute.xlu0 %654
      %656 = vrot.lane.b32.xlu0 %v647, 16
      %v657 = vpop.permute.xlu0 %656
      %v658 = vsel %vm419, %v655, %v657
      %v659 = vsel %vm419, %v657, %v655
      %v660 = vperm.slane %v198, 3
      %v661 = vperm.slane %v198, 7
      %v664 = vperm.slane %v660, 3
      %v665 = vperm.slane %v661, 3
      %v666 = vmul.f32 %v664, %v659
      %v667 = vmul.f32 %v665, %v658
      %v668 = vperm.slane %v236, 3
      %v669 = vperm.slane %v236, 7
      %v672 = vperm.slane %v668, 3
      %v673 = vperm.slane %v669, 3
      %v674 = vmul.f32 %v672, %v652
      %v675 = vmul.f32 %v673, %v653
      %v676 = vadd.f32 %v666, %v674
      %v677 = vadd.f32 %v667, %v675
      %v678 = vadd.f32 %v543, %v676
      %v679 = vadd.f32 %v544, %v677
      %680 = vrot.lane.b32.xlu0 %v678, 127
      %v681 = vpop.permute.xlu0 %680
      %682 = vrot.lane.b32.xlu0 %v679, 127
      %v683 = vpop.permute.xlu0 %682
      %v684 = vsel %vm212, %v681, %v683
      %v685 = vsel %vm212, %v683, %v681
      %686 = vrot.lane.b32.xlu0 %v678, 1
      %v687 = vpop.permute.xlu0 %686
      %688 = vrot.lane.b32.xlu0 %v679, 1
      %v689 = vpop.permute.xlu0 %688
      %v690 = vsel %vm224, %v687, %v689
      %v691 = vsel %vm224, %v689, %v687
      %v692 = vmul.f32 %v232, %v684
      %v693 = vmul.f32 %v233, %v685
      %v694 = vmul.f32 %v242, %v691
      %v695 = vmul.f32 %v243, %v690
      %v696 = vadd.f32 %v692, %v694
      %v697 = vadd.f32 %v693, %v695
      %v698 = vmul.f32 %v252, %v691
      %v699 = vmul.f32 %v253, %v690
      %v700 = vmul.f32 %v260, %v684
      %v701 = vmul.f32 %v261, %v685
      %v702 = vadd.f32 %v698, %v700
      %v703 = vadd.f32 %v699, %v701
      %v704 = vld [vmem:[%s2] sm:$0xf]
      %706 = vset.pattern.permute.xlu0 0
      %707 = vperm.xlu0 %706, %v704
      %v708 = vpop.permute.xlu0 %707
      %v710 = vperm.slane %v696, 0
      %v711 = vperm.slane %v697, 0
      %v712 = vmul.f32 %v708, %v710
      %v713 = vmul.f32 %v708, %v711
      %714 = vset.pattern.permute.xlu0 1
      %715 = vperm.xlu0 %714, %v704
      %v716 = vpop.permute.xlu0 %715
      %v718 = vperm.slane %v696, 1
      %v719 = vperm.slane %v697, 1
      %v720 = vmul.f32 %v716, %v718
      %v721 = vmul.f32 %v716, %v719
      %v722 = vadd.f32 %v712, %v720
      %v723 = vadd.f32 %v713, %v721
      %724 = vset.pattern.permute.xlu0 2
      %725 = vperm.xlu0 %724, %v704
      %v726 = vpop.permute.xlu0 %725
      %v728 = vperm.slane %v696, 2
      %v729 = vperm.slane %v697, 2
      %v730 = vmul.f32 %v726, %v728
      %v731 = vmul.f32 %v726, %v729
      %v732 = vadd.f32 %v722, %v730
      %v733 = vadd.f32 %v723, %v731
      %734 = vset.pattern.permute.xlu0 3
      %735 = vperm.xlu0 %734, %v704
      %v736 = vpop.permute.xlu0 %735
      %v738 = vperm.slane %v696, 3
      %v739 = vperm.slane %v697, 3
      %v740 = vmul.f32 %v736, %v738
      %v741 = vmul.f32 %v736, %v739
      %v742 = vadd.f32 %v732, %v740
      %v743 = vadd.f32 %v733, %v741
      %s744 = scalar_lea.vmem %s2, 4
      %v745 = vld [vmem:[%s744] sm:$0xf]
      %747 = vset.pattern.permute.xlu0 0
      %748 = vperm.xlu0 %747, %v745
      %v749 = vpop.permute.xlu0 %748
      %v751 = vperm.slane %v678, 0
      %v752 = vperm.slane %v679, 0
      %v753 = vmul.f32 %v749, %v751
      %v754 = vmul.f32 %v749, %v752
      %755 = vset.pattern.permute.xlu0 1
      %756 = vperm.xlu0 %755, %v745
      %v757 = vpop.permute.xlu0 %756
      %v759 = vperm.slane %v678, 1
      %v760 = vperm.slane %v679, 1
      %v761 = vmul.f32 %v757, %v759
      %v762 = vmul.f32 %v757, %v760
      %v763 = vadd.f32 %v753, %v761
      %v764 = vadd.f32 %v754, %v762
      %765 = vset.pattern.permute.xlu0 2
      %766 = vperm.xlu0 %765, %v745
      %v767 = vpop.permute.xlu0 %766
      %v769 = vperm.slane %v678, 2
      %v770 = vperm.slane %v679, 2
      %v771 = vmul.f32 %v767, %v769
      %v772 = vmul.f32 %v767, %v770
      %v773 = vadd.f32 %v763, %v771
      %v774 = vadd.f32 %v764, %v772
      %775 = vset.pattern.permute.xlu0 3
      %776 = vperm.xlu0 %775, %v745
      %v777 = vpop.permute.xlu0 %776
      %v779 = vperm.slane %v678, 3
      %v780 = vperm.slane %v679, 3
      %v781 = vmul.f32 %v777, %v779
      %v782 = vmul.f32 %v777, %v780
      %v783 = vadd.f32 %v773, %v781
      %v784 = vadd.f32 %v774, %v782
      %v785 = vadd.f32 %v742, %v783
      %v786 = vadd.f32 %v743, %v784
      %s787 = scalar_lea.vmem %s2, 8
      %v788 = vld [vmem:[%s787] sm:$0xf]
      %790 = vset.pattern.permute.xlu0 0
      %791 = vperm.xlu0 %790, %v788
      %v792 = vpop.permute.xlu0 %791
      %v794 = vperm.slane %v702, 0
      %v795 = vperm.slane %v703, 0
      %v796 = vmul.f32 %v792, %v794
      %v797 = vmul.f32 %v792, %v795
      %798 = vset.pattern.permute.xlu0 1
      %799 = vperm.xlu0 %798, %v788
      %v800 = vpop.permute.xlu0 %799
      %v802 = vperm.slane %v702, 1
      %v803 = vperm.slane %v703, 1
      %v804 = vmul.f32 %v800, %v802
      %v805 = vmul.f32 %v800, %v803
      %v806 = vadd.f32 %v796, %v804
      %v807 = vadd.f32 %v797, %v805
      %808 = vset.pattern.permute.xlu0 2
      %809 = vperm.xlu0 %808, %v788
      %v810 = vpop.permute.xlu0 %809
      %v812 = vperm.slane %v702, 2
      %v813 = vperm.slane %v703, 2
      %v814 = vmul.f32 %v810, %v812
      %v815 = vmul.f32 %v810, %v813
      %v816 = vadd.f32 %v806, %v814
      %v817 = vadd.f32 %v807, %v815
      %818 = vset.pattern.permute.xlu0 3
      %819 = vperm.xlu0 %818, %v788
      %v820 = vpop.permute.xlu0 %819
      %v822 = vperm.slane %v702, 3
      %v823 = vperm.slane %v703, 3
      %v824 = vmul.f32 %v820, %v822
      %v825 = vmul.f32 %v820, %v823
      %v826 = vadd.f32 %v816, %v824
      %v827 = vadd.f32 %v817, %v825
      %v828 = vadd.f32 %v785, %v826
      %v829 = vadd.f32 %v786, %v827
      %830 = vrot.lane.b32.xlu0 %v828, 112
      %v831 = vpop.permute.xlu0 %830
      %832 = vrot.lane.b32.xlu0 %v829, 112
      %v833 = vpop.permute.xlu0 %832
      %v834 = vsel %vm412, %v831, %v833
      %v835 = vsel %vm412, %v833, %v831
      %836 = vrot.lane.b32.xlu0 %v828, 16
      %v837 = vpop.permute.xlu0 %836
      %838 = vrot.lane.b32.xlu0 %v829, 16
      %v839 = vpop.permute.xlu0 %838
      %v840 = vsel %vm419, %v837, %v839
      %v841 = vsel %vm419, %v839, %v837
      %v842 = vmul.f32 %v426, %v834
      %v843 = vmul.f32 %v427, %v835
      %v844 = vmul.f32 %v434, %v841
      %v845 = vmul.f32 %v435, %v840
      %v846 = vadd.f32 %v842, %v844
      %v847 = vadd.f32 %v843, %v845
      %s848 = scalar_lea.vmem %s2, 12
      %v849 = vld [vmem:[%s848] sm:$0xf]
      %851 = vset.pattern.permute.xlu0 0
      %852 = vperm.xlu0 %851, %v849
      %v853 = vpop.permute.xlu0 %852
      %v855 = vmul.f32 %v853, %v710
      %v856 = vmul.f32 %v853, %v711
      %857 = vset.pattern.permute.xlu0 1
      %858 = vperm.xlu0 %857, %v849
      %v859 = vpop.permute.xlu0 %858
      %v861 = vmul.f32 %v859, %v718
      %v862 = vmul.f32 %v859, %v719
      %v863 = vadd.f32 %v855, %v861
      %v864 = vadd.f32 %v856, %v862
      %865 = vset.pattern.permute.xlu0 2
      %866 = vperm.xlu0 %865, %v849
      %v867 = vpop.permute.xlu0 %866
      %v869 = vmul.f32 %v867, %v728
      %v870 = vmul.f32 %v867, %v729
      %v871 = vadd.f32 %v863, %v869
      %v872 = vadd.f32 %v864, %v870
      %873 = vset.pattern.permute.xlu0 3
      %874 = vperm.xlu0 %873, %v849
      %v875 = vpop.permute.xlu0 %874
      %v877 = vmul.f32 %v875, %v738
      %v878 = vmul.f32 %v875, %v739
      %v879 = vadd.f32 %v871, %v877
      %v880 = vadd.f32 %v872, %v878
      %s881 = scalar_lea.vmem %s2, 16
      %v882 = vld [vmem:[%s881] sm:$0xf]
      %884 = vset.pattern.permute.xlu0 0
      %885 = vperm.xlu0 %884, %v882
      %v886 = vpop.permute.xlu0 %885
      %v888 = vmul.f32 %v886, %v751
      %v889 = vmul.f32 %v886, %v752
      %890 = vset.pattern.permute.xlu0 1
      %891 = vperm.xlu0 %890, %v882
      %v892 = vpop.permute.xlu0 %891
      %v894 = vmul.f32 %v892, %v759
      %v895 = vmul.f32 %v892, %v760
      %v896 = vadd.f32 %v888, %v894
      %v897 = vadd.f32 %v889, %v895
      %898 = vset.pattern.permute.xlu0 2
      %899 = vperm.xlu0 %898, %v882
      %v900 = vpop.permute.xlu0 %899
      %v902 = vmul.f32 %v900, %v769
      %v903 = vmul.f32 %v900, %v770
      %v904 = vadd.f32 %v896, %v902
      %v905 = vadd.f32 %v897, %v903
      %906 = vset.pattern.permute.xlu0 3
      %907 = vperm.xlu0 %906, %v882
      %v908 = vpop.permute.xlu0 %907
      %v910 = vmul.f32 %v908, %v779
      %v911 = vmul.f32 %v908, %v780
      %v912 = vadd.f32 %v904, %v910
      %v913 = vadd.f32 %v905, %v911
      %v914 = vadd.f32 %v879, %v912
      %v915 = vadd.f32 %v880, %v913
      %s916 = scalar_lea.vmem %s2, 20
      %v917 = vld [vmem:[%s916] sm:$0xf]
      %919 = vset.pattern.permute.xlu0 0
      %920 = vperm.xlu0 %919, %v917
      %v921 = vpop.permute.xlu0 %920
      %v923 = vmul.f32 %v921, %v794
      %v924 = vmul.f32 %v921, %v795
      %925 = vset.pattern.permute.xlu0 1
      %926 = vperm.xlu0 %925, %v917
      %v927 = vpop.permute.xlu0 %926
      %v929 = vmul.f32 %v927, %v802
      %v930 = vmul.f32 %v927, %v803
      %v931 = vadd.f32 %v923, %v929
      %v932 = vadd.f32 %v924, %v930
      %933 = vset.pattern.permute.xlu0 2
      %934 = vperm.xlu0 %933, %v917
      %v935 = vpop.permute.xlu0 %934
      %v937 = vmul.f32 %v935, %v812
      %v938 = vmul.f32 %v935, %v813
      %v939 = vadd.f32 %v931, %v937
      %v940 = vadd.f32 %v932, %v938
      %941 = vset.pattern.permute.xlu0 3
      %942 = vperm.xlu0 %941, %v917
      %v943 = vpop.permute.xlu0 %942
      %v945 = vmul.f32 %v943, %v822
      %v946 = vmul.f32 %v943, %v823
      %v947 = vadd.f32 %v939, %v945
      %v948 = vadd.f32 %v940, %v946
      %v949 = vadd.f32 %v914, %v947
      %v950 = vadd.f32 %v915, %v948
      %v951 = vadd.f32 %v846, %v949
      %v952 = vadd.f32 %v847, %v950
      %s953 = scalar_lea.vmem %s2, 24
      %v954 = vld [vmem:[%s953] sm:$0xf]
      %956 = vset.pattern.permute.xlu0 0
      %957 = vperm.xlu0 %956, %v954
      %v958 = vpop.permute.xlu0 %957
      %v960 = vmul.f32 %v958, %v710
      %v961 = vmul.f32 %v958, %v711
      %962 = vset.pattern.permute.xlu0 1
      %963 = vperm.xlu0 %962, %v954
      %v964 = vpop.permute.xlu0 %963
      %v966 = vmul.f32 %v964, %v718
      %v967 = vmul.f32 %v964, %v719
      %v968 = vadd.f32 %v960, %v966
      %v969 = vadd.f32 %v961, %v967
      %970 = vset.pattern.permute.xlu0 2
      %971 = vperm.xlu0 %970, %v954
      %v972 = vpop.permute.xlu0 %971
      %v974 = vmul.f32 %v972, %v728
      %v975 = vmul.f32 %v972, %v729
      %v976 = vadd.f32 %v968, %v974
      %v977 = vadd.f32 %v969, %v975
      %978 = vset.pattern.permute.xlu0 3
      %979 = vperm.xlu0 %978, %v954
      %v980 = vpop.permute.xlu0 %979
      %v982 = vmul.f32 %v980, %v738
      %v983 = vmul.f32 %v980, %v739
      %v984 = vadd.f32 %v976, %v982
      %v985 = vadd.f32 %v977, %v983
      %s986 = scalar_lea.vmem %s2, 28
      %v987 = vld [vmem:[%s986] sm:$0xf]
      %989 = vset.pattern.permute.xlu0 0
      %990 = vperm.xlu0 %989, %v987
      %v991 = vpop.permute.xlu0 %990
      %v993 = vmul.f32 %v991, %v751
      %v994 = vmul.f32 %v991, %v752
      %995 = vset.pattern.permute.xlu0 1
      %996 = vperm.xlu0 %995, %v987
      %v997 = vpop.permute.xlu0 %996
      %v999 = vmul.f32 %v997, %v759
      %v1000 = vmul.f32 %v997, %v760
      %v1001 = vadd.f32 %v993, %v999
      %v1002 = vadd.f32 %v994, %v1000
      %1003 = vset.pattern.permute.xlu0 2
      %1004 = vperm.xlu0 %1003, %v987
      %v1005 = vpop.permute.xlu0 %1004
      %v1007 = vmul.f32 %v1005, %v769
      %v1008 = vmul.f32 %v1005, %v770
      %v1009 = vadd.f32 %v1001, %v1007
      %v1010 = vadd.f32 %v1002, %v1008
      %1011 = vset.pattern.permute.xlu0 3
      %1012 = vperm.xlu0 %1011, %v987
      %v1013 = vpop.permute.xlu0 %1012
      %v1015 = vmul.f32 %v1013, %v779
      %v1016 = vmul.f32 %v1013, %v780
      %v1017 = vadd.f32 %v1009, %v1015
      %v1018 = vadd.f32 %v1010, %v1016
      %v1019 = vadd.f32 %v984, %v1017
      %v1020 = vadd.f32 %v985, %v1018
      %s1021 = scalar_lea.vmem %s2, 32
      %v1022 = vld [vmem:[%s1021] sm:$0xf]
      %1024 = vset.pattern.permute.xlu0 0
      %1025 = vperm.xlu0 %1024, %v1022
      %v1026 = vpop.permute.xlu0 %1025
      %v1028 = vmul.f32 %v1026, %v794
      %v1029 = vmul.f32 %v1026, %v795
      %1030 = vset.pattern.permute.xlu0 1
      %1031 = vperm.xlu0 %1030, %v1022
      %v1032 = vpop.permute.xlu0 %1031
      %v1034 = vmul.f32 %v1032, %v802
      %v1035 = vmul.f32 %v1032, %v803
      %v1036 = vadd.f32 %v1028, %v1034
      %v1037 = vadd.f32 %v1029, %v1035
      %1038 = vset.pattern.permute.xlu0 2
      %1039 = vperm.xlu0 %1038, %v1022
      %v1040 = vpop.permute.xlu0 %1039
      %v1042 = vmul.f32 %v1040, %v812
      %v1043 = vmul.f32 %v1040, %v813
      %v1044 = vadd.f32 %v1036, %v1042
      %v1045 = vadd.f32 %v1037, %v1043
      %1046 = vset.pattern.permute.xlu0 3
      %1047 = vperm.xlu0 %1046, %v1022
      %v1048 = vpop.permute.xlu0 %1047
      %v1050 = vmul.f32 %v1048, %v822
      %v1051 = vmul.f32 %v1048, %v823
      %v1052 = vadd.f32 %v1044, %v1050
      %v1053 = vadd.f32 %v1045, %v1051
      %v1054 = vadd.f32 %v1019, %v1052
      %v1055 = vadd.f32 %v1020, %v1053
      %1056 = vrot.lane.b32.xlu0 %v1054, 112
      %v1057 = vpop.permute.xlu0 %1056
      %1058 = vrot.lane.b32.xlu0 %v1055, 112
      %v1059 = vpop.permute.xlu0 %1058
      %v1060 = vsel %vm412, %v1057, %v1059
      %v1061 = vsel %vm412, %v1059, %v1057
      %1062 = vrot.lane.b32.xlu0 %v1054, 16
      %v1063 = vpop.permute.xlu0 %1062
      %1064 = vrot.lane.b32.xlu0 %v1055, 16
      %v1065 = vpop.permute.xlu0 %1064
      %v1066 = vsel %vm419, %v1063, %v1065
      %v1067 = vsel %vm419, %v1065, %v1063
      %v1068 = vmul.f32 %v664, %v1067
      %v1069 = vmul.f32 %v665, %v1066
      %v1070 = vmul.f32 %v672, %v1060
      %v1071 = vmul.f32 %v673, %v1061
      %v1072 = vadd.f32 %v1068, %v1070
      %v1073 = vadd.f32 %v1069, %v1071
      %v1074 = vadd.f32 %v951, %v1072
      %v1075 = vadd.f32 %v952, %v1073
      %v1078 = vrot.slane %v1075, 4
      %vm1079 = vcmask 1043456
      %v1080 = vsel %vm1079, %v1074, %v1078
      %v1082 = vadd.f32 %v199, %v1080
      %1083 = vst [vmem:[%s197] sm:$0xff] %v1082
      %p1084 = scmp.lt.s32.totalorder %s15, 1
      %s1085 = scalar_select %p1084, %s15, 1
      %s1086 = smul.addr %s1085, 2
      %s1087 = smul.addr %s1086, 4
      %s1088 = scalar_lea.vmem %s4, %s1087
      // Predicated region
      $region37: #{residual_block_forward.1} parent=35 // pred_check
        %p1089 = pneg %p122
      $region38: #{residual_block_forward.1} parent=35 // pred_check_branch
        %1091 = sbr.rel (%p1089) target = $region40
      $region39: #{residual_block_forward.1} parent=35 // pred_region
        _
      $region40: #{residual_block_forward.1} parent=35 // pred_fallthru
        _
    $region36: #{residual_block_forward.1} parent=5 // pred_fallthru
      _
    %p1092 = scmp.le.s32.totalorder 2, %s10
    // Predicated region
    $region41: #{residual_block_forward.1} parent=5 // pred_check
      %p1093 = pneg %p1092
    $region42: #{residual_block_forward.1} parent=5 // pred_check_branch
      %1095 = sbr.rel (%p1093) target = $region44
    $region43: #{residual_block_forward.1} parent=5 // pred_region
      %s1096 = ssub.s32 %s10, 2
      // Predicated region
      $region45: #{residual_block_forward.1} parent=43 // pred_check
        %p1097 = pneg %p128
      $region46: #{residual_block_forward.1} parent=43 // pred_check_branch
        %1099 = sbr.rel (%p1097) target = $region48
      $region47: #{residual_block_forward.1} parent=43 // pred_region
        %p1100 = scmp.lt.s32.totalorder %s16, 1
        %s1101 = scalar_select %p1100, %s16, 1
        %s1102 = smul.addr %s1101, 2
        %s1103 = smul.addr %s1102, 4
        %s1104 = scalar_lea.vmem %s4, %s1103
      $region48: #{residual_block_forward.1} parent=43 // pred_fallthru
        _
    $region44: #{residual_block_forward.1} parent=5 // pred_fallthru
      _
  $region6: #{residual_block_forward.1} parent=0 // loop_footer
    %s14 = sadd.s32 1, %s10
  $region7: #{residual_block_forward.1} parent=0 // loop_footer_branch
    %9 = sbr.rel target = $region3
  $region8: #{residual_block_forward.1} parent=0 // loop_exit
    _

</llo_original>
